<compile_context>
chip_gen: v5e
topology: v5e:2x2
jax: 0.10.0
libtpu: 0.0.40
codegen_flags: <defaults>
</compile_context>

<pallas_src>
import functools
import math

import jax
import jax.numpy as jnp
from jax.experimental import pallas as pl
from jax.experimental.pallas import tpu as pltpu

EPS = 1e-5  # torch.nn.LayerNorm default


def _layer_norm(x, w, b):
    # x: (R, D) f32, w/b: (1, D) f32
    mean = jnp.mean(x, axis=-1, keepdims=True)
    var = jnp.mean((x - mean) ** 2, axis=-1, keepdims=True)
    return (x - mean) * jax.lax.rsqrt(var + EPS) * w + b


def _mha(q, kv_ref, wo_ref, bo, oacc_ref, *, heads, dim_head, cdt, exact_recip):
    """Multi-head attention from a pre-projected Q and a cached K|V buffer.

    q:        (R, H*dh) f32, softmax scale already folded into Wq.
    kv_ref:   VMEM ref (S, 2*H*dh); columns [0:H*dh]=K, [H*dh:2*H*dh]=V (cdt).
    oacc_ref: VMEM ref (R, H*dh) assembling per-head outputs so the output
              projection is a single (H*dh, D) MXU dot.
    """
    f32 = jnp.float32
    hd = heads * dim_head
    # Static head loop: heads is small here.
    # TODO(synk): for large `heads`, switch to lax.fori_loop(unroll=True) over a
    #             scratch-resident q to bound vreg live ranges.
    for h in range(heads):
        lo = h * dim_head
        qh = q[:, lo:lo + dim_head].astype(cdt)
        kh = kv_ref[:, lo:lo + dim_head]
        vh = kv_ref[:, hd + lo:hd + lo + dim_head]
        # scores: contract the dh axis of both operands (A @ B^T on the MXU).
        s = jax.lax.dot_general(qh, kh, (((1,), (1,)), ((), ())),
                                preferred_element_type=f32)           # (R, S)
        s = s - jnp.max(s, axis=-1, keepdims=True)
        p = jnp.exp(s)
        denom = jnp.sum(p, axis=-1, keepdims=True)
        if exact_recip:
            p = p / denom                                             # f32 path
        else:
            p = p * pl.reciprocal(denom, approx=True)                 # EUP slot
        oh = jnp.dot(p.astype(cdt), vh, preferred_element_type=f32)   # (R, dh)
        oacc_ref[:, lo:lo + dim_head] = oh.astype(cdt)
    # Single lane-dense output projection over all heads (+ to_out bias).
    return jnp.dot(oacc_ref[...], wo_ref[...], preferred_element_type=f32) + bo


def _block_kernel(x_ref, ctx_ref,
                  ln1w_ref, ln1b_ref, ln2w_ref, ln2b_ref, ln3w_ref, ln3b_ref,
                  wq1_ref, wkv1_ref, wo1_ref, bo1_ref,
                  wq2_ref, wkv2_ref, wo2_ref, bo2_ref,
                  w1v_ref, b1v_ref, w1g_ref, b1g_ref, w2_ref, b2_ref,
                  out_ref,
                  xn1_sc, kv1_sc, kv2_sc, oacc_sc,
                  *, heads, dim_head, tq, compute_dtype, exact_recip):
    f32 = jnp.float32
    cdt = compute_dtype
    i = pl.program_id(1)

    # ---- per-batch work, cached in persistent VMEM scratch (runs once / batch)
    @pl.when(i == 0)
    def _():
        xn1 = _layer_norm(x_ref[0].astype(f32),
                          ln1w_ref[...], ln1b_ref[...]).astype(cdt)    # (N, D)
        xn1_sc[...] = xn1
        kv1_sc[...] = jnp.dot(xn1, wkv1_ref[...],
                              preferred_element_type=f32).astype(cdt)  # (N, 2*H*dh)
        kv2_sc[...] = jnp.dot(ctx_ref[0].astype(cdt), wkv2_ref[...],
                              preferred_element_type=f32).astype(cdt)  # (M, 2*H*dh)

    row0 = pl.multiple_of(i * tq, tq)
    x_t = x_ref[0, pl.ds(row0, tq), :].astype(f32)         # residual tile (TQ, D)

    # ---- attn1: self-attention over LayerNorm1(x), residual add -------------
    q1 = jnp.dot(xn1_sc[pl.ds(row0, tq), :], wq1_ref[...],
                 preferred_element_type=f32)               # (TQ, H*dh), pre-scaled
    y1 = _mha(q1, kv1_sc, wo1_ref, bo1_ref[...], oacc_sc,
              heads=heads, dim_head=dim_head, cdt=cdt, exact_recip=exact_recip)
    x1 = x_t + y1

    # ---- attn2: cross-attention against raw context, residual add -----------
    xn2 = _layer_norm(x1, ln2w_ref[...], ln2b_ref[...]).astype(cdt)
    q2 = jnp.dot(xn2, wq2_ref[...], preferred_element_type=f32)
    y2 = _mha(q2, kv2_sc, wo2_ref, bo2_ref[...], oacc_sc,
              heads=heads, dim_head=dim_head, cdt=cdt, exact_recip=exact_recip)
    x2 = x1 + y2

    # ---- GEGLU feed-forward (value/gate split), residual add ----------------
    xn3 = _layer_norm(x2, ln3w_ref[...], ln3b_ref[...]).astype(cdt)
    hv = jnp.dot(xn3, w1v_ref[...], preferred_element_type=f32) + b1v_ref[...]
    hg = jnp.dot(xn3, w1g_ref[...], preferred_element_type=f32) + b1g_ref[...]
    # exact (erf-based) GELU, matching torch F.gelu default
    gelu_g = 0.5 * hg * (1.0 + jax.lax.erf(hg * (1.0 / math.sqrt(2.0))))
    u = (hv * gelu_g).astype(cdt)
    y3 = jnp.dot(u, w2_ref[...], preferred_element_type=f32) + b2_ref[...]

    out_ref[0] = (x2 + y3).astype(out_ref.dtype)


def prepare_block_params(params, *, heads, dim_head, compute_dtype=jnp.bfloat16):
    """One-time weight pre-formatting (do this OUTSIDE the per-step call):
    compute-dtype cast, K|V concat, softmax scale folded into Wq, GEGLU split."""
    p = params
    wdt = compute_dtype
    f32 = jnp.float32
    scale = dim_head ** -0.5
    inner = p["ff_w2"].shape[0]
    w1, b1 = p["ff_w1"], p["ff_b1"]
    return {
        "ln1w": p["norm1_w"].astype(f32), "ln1b": p["norm1_b"].astype(f32),
        "ln2w": p["norm2_w"].astype(f32), "ln2b": p["norm2_b"].astype(f32),
        "ln3w": p["norm3_w"].astype(f32), "ln3b": p["norm3_b"].astype(f32),
        "wq1": (p["attn1_wq"] * scale).astype(wdt),
        "wkv1": jnp.concatenate([p["attn1_wk"], p["attn1_wv"]], axis=1).astype(wdt),
        "wo1": p["attn1_wo"].astype(wdt), "bo1": p["attn1_bo"].astype(f32),
        "wq2": (p["attn2_wq"] * scale).astype(wdt),
        "wkv2": jnp.concatenate([p["attn2_wk"], p["attn2_wv"]], axis=1).astype(wdt),
        "wo2": p["attn2_wo"].astype(wdt), "bo2": p["attn2_bo"].astype(f32),
        "w1v": w1[:, :inner].astype(wdt), "b1v": b1[:, :inner].astype(f32),
        "w1g": w1[:, inner:].astype(wdt), "b1g": b1[:, inner:].astype(f32),
        "w2": p["ff_w2"].astype(wdt), "b2": p["ff_b2"].astype(f32),
    }


def basic_transformer_block(x, context, prep, *, heads, dim_head,
                            q_tile=None, vmem_limit_bytes=None):
    B, N, D = x.shape
    M, Dc = context.shape[1], context.shape[2]
    hd = heads * dim_head
    inner = prep["w2"].shape[0]
    cdt = jnp.dtype(prep["wq1"].dtype)
    exact_recip = (cdt == jnp.dtype(jnp.float32))

    # Row-tile size: keep grid >= 2 programs where possible (v7x: 2 TCs share
    # "parallel" axes) and bound the per-tile footprint for v7x's 64 MiB VMEM.
    if q_tile is None:
        q_tile = 128
    TQ = min(q_tile, N)
    if TQ != N and (N % TQ != 0 or TQ % 8 != 0):
        TQ = N   # TODO(synk): ragged N via masking / pl.BoundedSlice
    NT = N // TQ

    cb = cdt.itemsize
    est = (N * D * x.dtype.itemsize + M * Dc * context.dtype.itemsize     # x/ctx (single-buffered)
           + 2 * TQ * D * x.dtype.itemsize                                # out (double-buffered)
           + (N * D + (N + M) * 2 * hd + TQ * hd) * cb                    # VMEM caches
           + (2 * D * hd + D * 2 * hd + Dc * 2 * hd + 2 * hd * D
              + 3 * D * inner) * cb                                       # weights
           + (TQ * max(N, M) + 2 * TQ * inner + 10 * TQ * D) * 4)         # f32 temporaries
    if vmem_limit_bytes is None:
        vmem_limit_bytes = int(min(max(2 * est, 8 << 20), 48 << 20))

    def rep(shape):   # replicated operand, constant block index -> single buffer
        nd = len(shape)
        return pl.BlockSpec(shape, lambda b, i, _nd=nd: (0,) * _nd,
                            pipeline_mode=pl.Buffered(1))

    in_specs = [
        pl.BlockSpec((1, N, D), lambda b, i: (b, 0, 0),
                     pipeline_mode=pl.Buffered(1)),      # x: full seq, per batch
        pl.BlockSpec((1, M, Dc), lambda b, i: (b, 0, 0),
                     pipeline_mode=pl.Buffered(1)),      # context, per batch
        rep((1, D)), rep((1, D)), rep((1, D)), rep((1, D)), rep((1, D)), rep((1, D)),
        rep((D, hd)), rep((D, 2 * hd)), rep((hd, D)), rep((1, D)),
        rep((D, hd)), rep((Dc, 2 * hd)), rep((hd, D)), rep((1, D)),
        rep((D, inner)), rep((1, inner)), rep((D, inner)), rep((1, inner)),
        rep((inner, D)), rep((1, D)),
    ]

    args = (x, context,
            prep["ln1w"], prep["ln1b"], prep["ln2w"], prep["ln2b"],
            prep["ln3w"], prep["ln3b"],
            prep["wq1"], prep["wkv1"], prep["wo1"], prep["bo1"],
            prep["wq2"], prep["wkv2"], prep["wo2"], prep["bo2"],
            prep["w1v"], prep["b1v"], prep["w1g"], prep["b1g"],
            prep["w2"], prep["b2"])

    kernel = functools.partial(_block_kernel, heads=heads, dim_head=dim_head,
                               tq=TQ, compute_dtype=cdt, exact_recip=exact_recip)

    return pl.pallas_call(
        kernel,
        out_shape=jax.ShapeDtypeStruct((B, N, D), x.dtype),
        grid=(B, NT),
        in_specs=in_specs,
        out_specs=pl.BlockSpec((1, TQ, D), lambda b, i: (b, i, 0)),
        scratch_shapes=[
            pltpu.VMEM((N, D), cdt),          # LayerNorm1(x) cache
            pltpu.VMEM((N, 2 * hd), cdt),     # attn1 K|V cache
            pltpu.VMEM((M, 2 * hd), cdt),     # attn2 K|V cache (raw context)
            pltpu.VMEM((TQ, hd), cdt),        # per-head output assembly buffer
        ],
        compiler_params=pltpu.CompilerParams(
            # batch axis parallel (megacore / v7x 2 TCs); inner axis carries the
            # per-batch VMEM caches -> arbitrary.
            dimension_semantics=("parallel", "arbitrary"),
            vmem_limit_bytes=vmem_limit_bytes),
    )(*args)


# -----------------------------------------------------------------------------
# Pure-JAX f32 reference (for correctness check)
# -----------------------------------------------------------------------------
def _ref_ln(x, w, b):
    mean = jnp.mean(x, axis=-1, keepdims=True)
    var = jnp.mean((x - mean) ** 2, axis=-1, keepdims=True)
    return (x - mean) / jnp.sqrt(var + EPS) * w + b


def _ref_attn(xn, ctx, wq, wk, wv, wo, bo, heads, dim_head):
    B, N, _ = xn.shape
    M = ctx.shape[1]
    q = (xn @ wq).reshape(B, N, heads, dim_head).transpose(0, 2, 1, 3)
    k = (ctx @ wk).reshape(B, M, heads, dim_head).transpose(0, 2, 1, 3)
    v = (ctx @ wv).reshape(B, M, heads, dim_head).transpose(0, 2, 1, 3)
    s = jnp.einsum("bhnd,bhmd->bhnm", q, k) * (dim_head ** -0.5)
    p = jax.nn.softmax(s, axis=-1)
    o = jnp.einsum("bhnm,bhmd->bhnd", p, v).transpose(0, 2, 1, 3).reshape(B, N, -1)
    return o @ wo + bo


def _ref_block(x, ctx, p, heads, dim_head):
    xn = _ref_ln(x, p["norm1_w"], p["norm1_b"])
    x = x + _ref_attn(xn, xn, p["attn1_wq"], p["attn1_wk"], p["attn1_wv"],
                      p["attn1_wo"], p["attn1_bo"], heads, dim_head)
    xn = _ref_ln(x, p["norm2_w"], p["norm2_b"])
    x = x + _ref_attn(xn, ctx, p["attn2_wq"], p["attn2_wk"], p["attn2_wv"],
                      p["attn2_wo"], p["attn2_bo"], heads, dim_head)
    xn = _ref_ln(x, p["norm3_w"], p["norm3_b"])
    h = xn @ p["ff_w1"] + p["ff_b1"]
    inner = p["ff_w2"].shape[0]
    a, gate = h[..., :inner], h[..., inner:]
    y = a * (0.5 * gate * (1.0 + jax.lax.erf(gate / jnp.sqrt(2.0))))
    x = x + (y @ p["ff_w2"] + p["ff_b2"])
    return x


def _make_params(key, dim, context_dim, heads, d_head, ff_mult=4, std=0.02):
    inner_dim = heads * d_head
    ff_inner = ff_mult * dim
    ks = jax.random.split(key, 14)

    def normal(k, shape):
        return (std * jax.random.normal(k, shape)).astype(jnp.float32)

    return {
        "norm1_w": jnp.ones((1, dim), jnp.float32),
        "norm1_b": jnp.zeros((1, dim), jnp.float32),
        "norm2_w": jnp.ones((1, dim), jnp.float32),
        "norm2_b": jnp.zeros((1, dim), jnp.float32),
        "norm3_w": jnp.ones((1, dim), jnp.float32),
        "norm3_b": jnp.zeros((1, dim), jnp.float32),
        "attn1_wq": normal(ks[0], (dim, inner_dim)),
        "attn1_wk": normal(ks[1], (dim, inner_dim)),
        "attn1_wv": normal(ks[2], (dim, inner_dim)),
        "attn1_wo": normal(ks[3], (inner_dim, dim)),
        "attn1_bo": normal(ks[4], (1, dim)),
        "attn2_wq": normal(ks[5], (dim, inner_dim)),
        "attn2_wk": normal(ks[6], (context_dim, inner_dim)),
        "attn2_wv": normal(ks[7], (context_dim, inner_dim)),
        "attn2_wo": normal(ks[8], (inner_dim, dim)),
        "attn2_bo": normal(ks[9], (1, dim)),
        "ff_w1": normal(ks[10], (dim, 2 * ff_inner)),
        "ff_b1": normal(ks[11], (1, 2 * ff_inner)),
        "ff_w2": normal(ks[12], (ff_inner, dim)),
        "ff_b2": normal(ks[13], (1, dim)),
    }


if __name__ == "__main__":
    key = jax.random.PRNGKey(0)
    k_p, k_x, k_c, k_p2, k_x2, k_c2 = jax.random.split(key, 6)

    # --- config A: module-spec shapes (dim=32, n_heads=4, d_head=8) ----------
    B, N, M = 2, 8, 8
    dim, n_heads, d_head, context_dim = 32, 4, 8, 32
    params = _make_params(k_p, dim, context_dim, n_heads, d_head)
    x = jax.random.normal(k_x, (B, N, dim), dtype=jnp.float32)
    context = jax.random.normal(k_c, (B, M, context_dim), dtype=jnp.float32)
    ref = _ref_block(x, context, params, n_heads, d_head)

    # f32 compute path: exact softmax division, tight numerical check
    prep32 = prepare_block_params(params, heads=n_heads, dim_head=d_head,
                                  compute_dtype=jnp.float32)
    out32 = jax.block_until_ready(
        basic_transformer_block(x, context, prep32, heads=n_heads, dim_head=d_head))
    assert out32.shape == ref.shape
    assert jnp.allclose(out32, ref, atol=1e-3, rtol=1e-3), \
        f"f32 max abs err {jnp.max(jnp.abs(out32 - ref))}"

    # bf16 MXU path (default perf config): looser check vs f32 reference
    prep16 = prepare_block_params(params, heads=n_heads, dim_head=d_head,
                                  compute_dtype=jnp.bfloat16)
    out16 = jax.block_until_ready(
        basic_transformer_block(x, context, prep16, heads=n_heads, dim_head=d_head))
    assert out16.shape == ref.shape
    assert jnp.allclose(out16, ref, atol=3e-2, rtol=3e-2), \
        f"bf16 max abs err {jnp.max(jnp.abs(out16 - ref))}"

    # --- config B: exercise the q-tiled path (NT>1, per-batch K/V caching) ---
    B2, N2, M2 = 2, 256, 64
    dim2, heads2, dh2, cdim2 = 64, 4, 16, 64
    params2 = _make_params(k_p2, dim2, cdim2, heads2, dh2)
    x2 = jax.random.normal(k_x2, (B2, N2, dim2), dtype=jnp.float32)
    ctx2 = jax.random.normal(k_c2, (B2, M2, cdim2), dtype=jnp.float32)
    ref2 = _ref_block(x2, ctx2, params2, heads2, dh2)
    prep2 = prepare_block_params(params2, heads=heads2, dim_head=dh2,
                                 compute_dtype=jnp.float32)
    out2 = jax.block_until_ready(
        basic_transformer_block(x2, ctx2, prep2, heads=heads2, dim_head=dh2,
                                q_tile=128))
    assert out2.shape == ref2.shape
    assert jnp.allclose(out2, ref2, atol=1e-3, rtol=1e-3), \
        f"tiled f32 max abs err {jnp.max(jnp.abs(out2 - ref2))}"

    print("KERNEL_OK")
</pallas_src>

<mosaic_0001>
module attributes {stable_mosaic.version = 11 : i64} {
  func.func @_block_kernel(%arg0: i32, %arg1: i32, %arg2: memref<1x8x32xf32, #tpu.memory_space<vmem>>, %arg3: memref<1x8x32xf32, #tpu.memory_space<vmem>>, %arg4: memref<1x32xf32, #tpu.memory_space<vmem>>, %arg5: memref<1x32xf32, #tpu.memory_space<vmem>>, %arg6: memref<1x32xf32, #tpu.memory_space<vmem>>, %arg7: memref<1x32xf32, #tpu.memory_space<vmem>>, %arg8: memref<1x32xf32, #tpu.memory_space<vmem>>, %arg9: memref<1x32xf32, #tpu.memory_space<vmem>>, %arg10: memref<32x32xf32, #tpu.memory_space<vmem>>, %arg11: memref<32x64xf32, #tpu.memory_space<vmem>>, %arg12: memref<32x32xf32, #tpu.memory_space<vmem>>, %arg13: memref<1x32xf32, #tpu.memory_space<vmem>>, %arg14: memref<32x32xf32, #tpu.memory_space<vmem>>, %arg15: memref<32x64xf32, #tpu.memory_space<vmem>>, %arg16: memref<32x32xf32, #tpu.memory_space<vmem>>, %arg17: memref<1x32xf32, #tpu.memory_space<vmem>>, %arg18: memref<32x128xf32, #tpu.memory_space<vmem>>, %arg19: memref<1x128xf32, #tpu.memory_space<vmem>>, %arg20: memref<32x128xf32, #tpu.memory_space<vmem>>, %arg21: memref<1x128xf32, #tpu.memory_space<vmem>>, %arg22: memref<128x32xf32, #tpu.memory_space<vmem>>, %arg23: memref<1x32xf32, #tpu.memory_space<vmem>>, %arg24: memref<1x8x32xf32, #tpu.memory_space<vmem>>, %arg25: memref<8x32xf32, #tpu.memory_space<vmem>>, %arg26: memref<8x64xf32, #tpu.memory_space<vmem>>, %arg27: memref<8x64xf32, #tpu.memory_space<vmem>>, %arg28: memref<8x32xf32, #tpu.memory_space<vmem>>) attributes {dimension_semantics = [#tpu.dimension_semantics<parallel>, #tpu.dimension_semantics<arbitrary>], iteration_bounds = array<i64: 2, 1>, scalar_prefetch = 0 : i64, scratch_operands = 4 : i64, tpu.core_type = #tpu.core_type<tc>, window_params = [{pipeline_mode = #tpu.pipeline_mode<synchronous>, transform_indices = @transform_0, window_bounds = array<i64: 1, 8, 32>}, {pipeline_mode = #tpu.pipeline_mode<synchronous>, transform_indices = @transform_1, window_bounds = array<i64: 1, 8, 32>}, {pipeline_mode = #tpu.pipeline_mode<synchronous>, transform_indices = @transform_2, window_bounds = array<i64: 1, 32>}, {pipeline_mode = #tpu.pipeline_mode<synchronous>, transform_indices = @transform_3, window_bounds = array<i64: 1, 32>}, {pipeline_mode = #tpu.pipeline_mode<synchronous>, transform_indices = @transform_4, window_bounds = array<i64: 1, 32>}, {pipeline_mode = #tpu.pipeline_mode<synchronous>, transform_indices = @transform_5, window_bounds = array<i64: 1, 32>}, {pipeline_mode = #tpu.pipeline_mode<synchronous>, transform_indices = @transform_6, window_bounds = array<i64: 1, 32>}, {pipeline_mode = #tpu.pipeline_mode<synchronous>, transform_indices = @transform_7, window_bounds = array<i64: 1, 32>}, {pipeline_mode = #tpu.pipeline_mode<synchronous>, transform_indices = @transform_8, window_bounds = array<i64: 32, 32>}, {pipeline_mode = #tpu.pipeline_mode<synchronous>, transform_indices = @transform_9, window_bounds = array<i64: 32, 64>}, {pipeline_mode = #tpu.pipeline_mode<synchronous>, transform_indices = @transform_10, window_bounds = array<i64: 32, 32>}, {pipeline_mode = #tpu.pipeline_mode<synchronous>, transform_indices = @transform_11, window_bounds = array<i64: 1, 32>}, {pipeline_mode = #tpu.pipeline_mode<synchronous>, transform_indices = @transform_12, window_bounds = array<i64: 32, 32>}, {pipeline_mode = #tpu.pipeline_mode<synchronous>, transform_indices = @transform_13, window_bounds = array<i64: 32, 64>}, {pipeline_mode = #tpu.pipeline_mode<synchronous>, transform_indices = @transform_14, window_bounds = array<i64: 32, 32>}, {pipeline_mode = #tpu.pipeline_mode<synchronous>, transform_indices = @transform_15, window_bounds = array<i64: 1, 32>}, {pipeline_mode = #tpu.pipeline_mode<synchronous>, transform_indices = @transform_16, window_bounds = array<i64: 32, 128>}, {pipeline_mode = #tpu.pipeline_mode<synchronous>, transform_indices = @transform_17, window_bounds = array<i64: 1, 128>}, {pipeline_mode = #tpu.pipeline_mode<synchronous>, transform_indices = @transform_18, window_bounds = array<i64: 32, 128>}, {pipeline_mode = #tpu.pipeline_mode<synchronous>, transform_indices = @transform_19, window_bounds = array<i64: 1, 128>}, {pipeline_mode = #tpu.pipeline_mode<synchronous>, transform_indices = @transform_20, window_bounds = array<i64: 128, 32>}, {pipeline_mode = #tpu.pipeline_mode<synchronous>, transform_indices = @transform_21, window_bounds = array<i64: 1, 32>}, {transform_indices = @transform_22, window_bounds = array<i64: 1, 8, 32>}]} {
    %c0_i32 = arith.constant 0 : i32
    %0 = arith.cmpi eq, %arg1, %c0_i32 : i32
    %1 = arith.extui %0 : i1 to i32
    %c0_i32_0 = arith.constant 0 : i32
    %2 = arith.cmpi ne, %1, %c0_i32_0 : i32
    scf.if %2 {
      %c0_134 = arith.constant 0 : index
      %c0_135 = arith.constant 0 : index
      %c0_136 = arith.constant 0 : index
      %224 = vector.load %arg2[%c0_134, %c0_135, %c0_136] : memref<1x8x32xf32, #tpu.memory_space<vmem>>, vector<1x8x32xf32>
      %225 = vector.shape_cast %224 : vector<1x8x32xf32> to vector<8x32xf32>
      %c0_137 = arith.constant 0 : index
      %c0_138 = arith.constant 0 : index
      %226 = vector.load %arg4[%c0_137, %c0_138] : memref<1x32xf32, #tpu.memory_space<vmem>>, vector<1x32xf32>
      %c0_139 = arith.constant 0 : index
      %c0_140 = arith.constant 0 : index
      %227 = vector.load %arg5[%c0_139, %c0_140] : memref<1x32xf32, #tpu.memory_space<vmem>>, vector<1x32xf32>
      %cst_141 = arith.constant dense<0.000000e+00> : vector<8xf32>
      %228 = vector.multi_reduction <add>, %225, %cst_141 [1] : vector<8x32xf32> to vector<8xf32>
      %229 = vector.shape_cast %228 : vector<8xf32> to vector<8x1xf32>
      %cst_142 = arith.constant 3.200000e+01 : f32
      %230 = vector.broadcast %cst_142 : f32 to vector<8x1xf32>
      %231 = arith.divf %229, %230 : vector<8x1xf32>
      %232 = vector.broadcast %231 : vector<8x1xf32> to vector<8x32xf32>
      %233 = arith.subf %225, %232 : vector<8x32xf32>
      %234 = arith.mulf %233, %233 : vector<8x32xf32>
      %cst_143 = arith.constant dense<0.000000e+00> : vector<8xf32>
      %235 = vector.multi_reduction <add>, %234, %cst_143 [1] : vector<8x32xf32> to vector<8xf32>
      %236 = vector.shape_cast %235 : vector<8xf32> to vector<8x1xf32>
      %cst_144 = arith.constant 3.200000e+01 : f32
      %237 = vector.broadcast %cst_144 : f32 to vector<8x1xf32>
      %238 = arith.divf %236, %237 : vector<8x1xf32>
      %239 = vector.broadcast %231 : vector<8x1xf32> to vector<8x32xf32>
      %240 = arith.subf %225, %239 : vector<8x32xf32>
      %cst_145 = arith.constant 9.99999974E-6 : f32
      %241 = vector.broadcast %cst_145 : f32 to vector<8x1xf32>
      %242 = arith.addf %238, %241 : vector<8x1xf32>
      %243 = math.rsqrt %242 : vector<8x1xf32>
      %244 = vector.broadcast %243 : vector<8x1xf32> to vector<8x32xf32>
      %245 = arith.mulf %240, %244 : vector<8x32xf32>
      %246 = vector.broadcast %226 : vector<1x32xf32> to vector<8x32xf32>
      %247 = arith.mulf %245, %246 : vector<8x32xf32>
      %248 = vector.broadcast %227 : vector<1x32xf32> to vector<8x32xf32>
      %249 = arith.addf %247, %248 : vector<8x32xf32>
      %c0_146 = arith.constant 0 : index
      %c0_147 = arith.constant 0 : index
      %250 = vector.load %arg25[%c0_146, %c0_147] : memref<8x32xf32, #tpu.memory_space<vmem>>, vector<8x32xf32>
      tpu.vector_store %arg25[%c0_146, %c0_147], %249 {strides = array<i32>} : memref<8x32xf32, #tpu.memory_space<vmem>>, vector<8x32xf32>,
      %c0_148 = arith.constant 0 : index
      %c0_149 = arith.constant 0 : index
      %251 = vector.load %arg11[%c0_148, %c0_149] : memref<32x64xf32, #tpu.memory_space<vmem>>, vector<32x64xf32>
      %cst_150 = arith.constant dense<0.000000e+00> : vector<8x64xf32>
      %252 = tpu.matmul %249, %251, %cst_150 {dimension_numbers = #tpu.dot_dimension_numbers<[1], [0], [0], [1], [0, 0, 1, 1], [], []>} : vector<8x32xf32>, vector<32x64xf32>, vector<8x64xf32> -> vector<8x64xf32>
      %c0_151 = arith.constant 0 : index
      %c0_152 = arith.constant 0 : index
      %253 = vector.load %arg26[%c0_151, %c0_152] : memref<8x64xf32, #tpu.memory_space<vmem>>, vector<8x64xf32>
      tpu.vector_store %arg26[%c0_151, %c0_152], %252 {strides = array<i32>} : memref<8x64xf32, #tpu.memory_space<vmem>>, vector<8x64xf32>,
      %c0_153 = arith.constant 0 : index
      %c0_154 = arith.constant 0 : index
      %c0_155 = arith.constant 0 : index
      %254 = vector.load %arg3[%c0_153, %c0_154, %c0_155] : memref<1x8x32xf32, #tpu.memory_space<vmem>>, vector<1x8x32xf32>
      %255 = vector.shape_cast %254 : vector<1x8x32xf32> to vector<8x32xf32>
      %c0_156 = arith.constant 0 : index
      %c0_157 = arith.constant 0 : index
      %256 = vector.load %arg15[%c0_156, %c0_157] : memref<32x64xf32, #tpu.memory_space<vmem>>, vector<32x64xf32>
      %cst_158 = arith.constant dense<0.000000e+00> : vector<8x64xf32>
      %257 = tpu.matmul %255, %256, %cst_158 {dimension_numbers = #tpu.dot_dimension_numbers<[1], [0], [0], [1], [0, 0, 1, 1], [], []>} : vector<8x32xf32>, vector<32x64xf32>, vector<8x64xf32> -> vector<8x64xf32>
      %c0_159 = arith.constant 0 : index
      %c0_160 = arith.constant 0 : index
      %258 = vector.load %arg27[%c0_159, %c0_160] : memref<8x64xf32, #tpu.memory_space<vmem>>, vector<8x64xf32>
      tpu.vector_store %arg27[%c0_159, %c0_160], %257 {strides = array<i32>} : memref<8x64xf32, #tpu.memory_space<vmem>>, vector<8x64xf32>,
    } else {
    }
    %c8_i32 = arith.constant 8 : i32
    %3 = arith.muli %arg1, %c8_i32 : i32
    %4 = tpu.assume_multiple %3, 8 : i32
    %c0 = arith.constant 0 : index
    %5 = arith.index_cast %4 : i32 to index
    %c0_1 = arith.constant 0 : index
    %6 = vector.load %arg2[%c0, %5, %c0_1] : memref<1x8x32xf32, #tpu.memory_space<vmem>>, vector<1x8x32xf32>
    %7 = vector.shape_cast %6 : vector<1x8x32xf32> to vector<8x32xf32>
    %8 = arith.index_cast %4 : i32 to index
    %c0_2 = arith.constant 0 : index
    %9 = vector.load %arg25[%8, %c0_2] : memref<8x32xf32, #tpu.memory_space<vmem>>, vector<8x32xf32>
    %c0_3 = arith.constant 0 : index
    %c0_4 = arith.constant 0 : index
    %10 = vector.load %arg10[%c0_3, %c0_4] : memref<32x32xf32, #tpu.memory_space<vmem>>, vector<32x32xf32>
    %cst = arith.constant dense<0.000000e+00> : vector<8x32xf32>
    %11 = tpu.matmul %9, %10, %cst {dimension_numbers = #tpu.dot_dimension_numbers<[1], [0], [0], [1], [0, 0, 1, 1], [], []>} : vector<8x32xf32>, vector<32x32xf32>, vector<8x32xf32> -> vector<8x32xf32>
    %c0_5 = arith.constant 0 : index
    %c0_6 = arith.constant 0 : index
    %12 = vector.load %arg13[%c0_5, %c0_6] : memref<1x32xf32, #tpu.memory_space<vmem>>, vector<1x32xf32>
    %13 = vector.extract_strided_slice %11 {offsets = [0, 0], sizes = [8, 8], strides = [1, 1]} : vector<8x32xf32> to vector<8x8xf32>
    %c0_7 = arith.constant 0 : index
    %c0_8 = arith.constant 0 : index
    %14 = vector.load %arg26[%c0_7, %c0_8] : memref<8x64xf32, #tpu.memory_space<vmem>>, vector<8x8xf32>
    %c0_9 = arith.constant 0 : index
    %c32 = arith.constant 32 : index
    %15 = vector.load %arg26[%c0_9, %c32] : memref<8x64xf32, #tpu.memory_space<vmem>>, vector<8x8xf32>
    %cst_10 = arith.constant dense<0.000000e+00> : vector<8x8xf32>
    %16 = tpu.matmul %13, %14, %cst_10 {dimension_numbers = #tpu.dot_dimension_numbers<[1], [1], [0], [0], [0, 0, 1, 0], [], []>} : vector<8x8xf32>, vector<8x8xf32>, vector<8x8xf32> -> vector<8x8xf32>
    %cst_11 = arith.constant dense<0xFF800000> : vector<8xf32>
    %17 = vector.multi_reduction <maximumf>, %16, %cst_11 [1] : vector<8x8xf32> to vector<8xf32>
    %18 = vector.shape_cast %17 : vector<8xf32> to vector<8x1xf32>
    %19 = vector.broadcast %18 : vector<8x1xf32> to vector<8x8xf32>
    %20 = arith.subf %16, %19 : vector<8x8xf32>
    %21 = math.exp %20 : vector<8x8xf32>
    %cst_12 = arith.constant dense<0.000000e+00> : vector<8xf32>
    %22 = vector.multi_reduction <add>, %21, %cst_12 [1] : vector<8x8xf32> to vector<8xf32>
    %23 = vector.shape_cast %22 : vector<8xf32> to vector<8x1xf32>
    %24 = vector.broadcast %23 : vector<8x1xf32> to vector<8x8xf32>
    %25 = arith.divf %21, %24 : vector<8x8xf32>
    %cst_13 = arith.constant dense<0.000000e+00> : vector<8x8xf32>
    %26 = tpu.matmul %25, %15, %cst_13 {dimension_numbers = #tpu.dot_dimension_numbers<[1], [0], [0], [1], [0, 0, 1, 1], [], []>} : vector<8x8xf32>, vector<8x8xf32>, vector<8x8xf32> -> vector<8x8xf32>
    %c0_14 = arith.constant 0 : index
    %c0_15 = arith.constant 0 : index
    %27 = vector.load %arg28[%c0_14, %c0_15] : memref<8x32xf32, #tpu.memory_space<vmem>>, vector<8x8xf32>
    tpu.vector_store %arg28[%c0_14, %c0_15], %26 {strides = array<i32>} : memref<8x32xf32, #tpu.memory_space<vmem>>, vector<8x8xf32>,
    %28 = vector.extract_strided_slice %11 {offsets = [0, 8], sizes = [8, 8], strides = [1, 1]} : vector<8x32xf32> to vector<8x8xf32>
    %c0_16 = arith.constant 0 : index
    %c8 = arith.constant 8 : index
    %29 = vector.load %arg26[%c0_16, %c8] : memref<8x64xf32, #tpu.memory_space<vmem>>, vector<8x8xf32>
    %c0_17 = arith.constant 0 : index
    %c40 = arith.constant 40 : index
    %30 = vector.load %arg26[%c0_17, %c40] : memref<8x64xf32, #tpu.memory_space<vmem>>, vector<8x8xf32>
    %cst_18 = arith.constant dense<0.000000e+00> : vector<8x8xf32>
    %31 = tpu.matmul %28, %29, %cst_18 {dimension_numbers = #tpu.dot_dimension_numbers<[1], [1], [0], [0], [0, 0, 1, 0], [], []>} : vector<8x8xf32>, vector<8x8xf32>, vector<8x8xf32> -> vector<8x8xf32>
    %cst_19 = arith.constant dense<0xFF800000> : vector<8xf32>
    %32 = vector.multi_reduction <maximumf>, %31, %cst_19 [1] : vector<8x8xf32> to vector<8xf32>
    %33 = vector.shape_cast %32 : vector<8xf32> to vector<8x1xf32>
    %34 = vector.broadcast %33 : vector<8x1xf32> to vector<8x8xf32>
    %35 = arith.subf %31, %34 : vector<8x8xf32>
    %36 = math.exp %35 : vector<8x8xf32>
    %cst_20 = arith.constant dense<0.000000e+00> : vector<8xf32>
    %37 = vector.multi_reduction <add>, %36, %cst_20 [1] : vector<8x8xf32> to vector<8xf32>
    %38 = vector.shape_cast %37 : vector<8xf32> to vector<8x1xf32>
    %39 = vector.broadcast %38 : vector<8x1xf32> to vector<8x8xf32>
    %40 = arith.divf %36, %39 : vector<8x8xf32>
    %cst_21 = arith.constant dense<0.000000e+00> : vector<8x8xf32>
    %41 = tpu.matmul %40, %30, %cst_21 {dimension_numbers = #tpu.dot_dimension_numbers<[1], [0], [0], [1], [0, 0, 1, 1], [], []>} : vector<8x8xf32>, vector<8x8xf32>, vector<8x8xf32> -> vector<8x8xf32>
    %c0_22 = arith.constant 0 : index
    %c8_23 = arith.constant 8 : index
    %42 = vector.load %arg28[%c0_22, %c8_23] : memref<8x32xf32, #tpu.memory_space<vmem>>, vector<8x8xf32>
    tpu.vector_store %arg28[%c0_22, %c8_23], %41 {strides = array<i32>} : memref<8x32xf32, #tpu.memory_space<vmem>>, vector<8x8xf32>,
    %43 = vector.extract_strided_slice %11 {offsets = [0, 16], sizes = [8, 8], strides = [1, 1]} : vector<8x32xf32> to vector<8x8xf32>
    %c0_24 = arith.constant 0 : index
    %c16 = arith.constant 16 : index
    %44 = vector.load %arg26[%c0_24, %c16] : memref<8x64xf32, #tpu.memory_space<vmem>>, vector<8x8xf32>
    %c0_25 = arith.constant 0 : index
    %c48 = arith.constant 48 : index
    %45 = vector.load %arg26[%c0_25, %c48] : memref<8x64xf32, #tpu.memory_space<vmem>>, vector<8x8xf32>
    %cst_26 = arith.constant dense<0.000000e+00> : vector<8x8xf32>
    %46 = tpu.matmul %43, %44, %cst_26 {dimension_numbers = #tpu.dot_dimension_numbers<[1], [1], [0], [0], [0, 0, 1, 0], [], []>} : vector<8x8xf32>, vector<8x8xf32>, vector<8x8xf32> -> vector<8x8xf32>
    %cst_27 = arith.constant dense<0xFF800000> : vector<8xf32>
    %47 = vector.multi_reduction <maximumf>, %46, %cst_27 [1] : vector<8x8xf32> to vector<8xf32>
    %48 = vector.shape_cast %47 : vector<8xf32> to vector<8x1xf32>
    %49 = vector.broadcast %48 : vector<8x1xf32> to vector<8x8xf32>
    %50 = arith.subf %46, %49 : vector<8x8xf32>
    %51 = math.exp %50 : vector<8x8xf32>
    %cst_28 = arith.constant dense<0.000000e+00> : vector<8xf32>
    %52 = vector.multi_reduction <add>, %51, %cst_28 [1] : vector<8x8xf32> to vector<8xf32>
    %53 = vector.shape_cast %52 : vector<8xf32> to vector<8x1xf32>
    %54 = vector.broadcast %53 : vector<8x1xf32> to vector<8x8xf32>
    %55 = arith.divf %51, %54 : vector<8x8xf32>
    %cst_29 = arith.constant dense<0.000000e+00> : vector<8x8xf32>
    %56 = tpu.matmul %55, %45, %cst_29 {dimension_numbers = #tpu.dot_dimension_numbers<[1], [0], [0], [1], [0, 0, 1, 1], [], []>} : vector<8x8xf32>, vector<8x8xf32>, vector<8x8xf32> -> vector<8x8xf32>
    %c0_30 = arith.constant 0 : index
    %c16_31 = arith.constant 16 : index
    %57 = vector.load %arg28[%c0_30, %c16_31] : memref<8x32xf32, #tpu.memory_space<vmem>>, vector<8x8xf32>
    tpu.vector_store %arg28[%c0_30, %c16_31], %56 {strides = array<i32>} : memref<8x32xf32, #tpu.memory_space<vmem>>, vector<8x8xf32>,
    %58 = vector.extract_strided_slice %11 {offsets = [0, 24], sizes = [8, 8], strides = [1, 1]} : vector<8x32xf32> to vector<8x8xf32>
    %c0_32 = arith.constant 0 : index
    %c24 = arith.constant 24 : index
    %59 = vector.load %arg26[%c0_32, %c24] : memref<8x64xf32, #tpu.memory_space<vmem>>, vector<8x8xf32>
    %c0_33 = arith.constant 0 : index
    %c56 = arith.constant 56 : index
    %60 = vector.load %arg26[%c0_33, %c56] : memref<8x64xf32, #tpu.memory_space<vmem>>, vector<8x8xf32>
    %cst_34 = arith.constant dense<0.000000e+00> : vector<8x8xf32>
    %61 = tpu.matmul %58, %59, %cst_34 {dimension_numbers = #tpu.dot_dimension_numbers<[1], [1], [0], [0], [0, 0, 1, 0], [], []>} : vector<8x8xf32>, vector<8x8xf32>, vector<8x8xf32> -> vector<8x8xf32>
    %cst_35 = arith.constant dense<0xFF800000> : vector<8xf32>
    %62 = vector.multi_reduction <maximumf>, %61, %cst_35 [1] : vector<8x8xf32> to vector<8xf32>
    %63 = vector.shape_cast %62 : vector<8xf32> to vector<8x1xf32>
    %64 = vector.broadcast %63 : vector<8x1xf32> to vector<8x8xf32>
    %65 = arith.subf %61, %64 : vector<8x8xf32>
    %66 = math.exp %65 : vector<8x8xf32>
    %cst_36 = arith.constant dense<0.000000e+00> : vector<8xf32>
    %67 = vector.multi_reduction <add>, %66, %cst_36 [1] : vector<8x8xf32> to vector<8xf32>
    %68 = vector.shape_cast %67 : vector<8xf32> to vector<8x1xf32>
    %69 = vector.broadcast %68 : vector<8x1xf32> to vector<8x8xf32>
    %70 = arith.divf %66, %69 : vector<8x8xf32>
    %cst_37 = arith.constant dense<0.000000e+00> : vector<8x8xf32>
    %71 = tpu.matmul %70, %60, %cst_37 {dimension_numbers = #tpu.dot_dimension_numbers<[1], [0], [0], [1], [0, 0, 1, 1], [], []>} : vector<8x8xf32>, vector<8x8xf32>, vector<8x8xf32> -> vector<8x8xf32>
    %c0_38 = arith.constant 0 : index
    %c24_39 = arith.constant 24 : index
    %72 = vector.load %arg28[%c0_38, %c24_39] : memref<8x32xf32, #tpu.memory_space<vmem>>, vector<8x8xf32>
    tpu.vector_store %arg28[%c0_38, %c24_39], %71 {strides = array<i32>} : memref<8x32xf32, #tpu.memory_space<vmem>>, vector<8x8xf32>,
    %c0_40 = arith.constant 0 : index
    %c0_41 = arith.constant 0 : index
    %73 = vector.load %arg28[%c0_40, %c0_41] : memref<8x32xf32, #tpu.memory_space<vmem>>, vector<8x32xf32>
    %c0_42 = arith.constant 0 : index
    %c0_43 = arith.constant 0 : index
    %74 = vector.load %arg12[%c0_42, %c0_43] : memref<32x32xf32, #tpu.memory_space<vmem>>, vector<32x32xf32>
    %cst_44 = arith.constant dense<0.000000e+00> : vector<8x32xf32>
    %75 = tpu.matmul %73, %74, %cst_44 {dimension_numbers = #tpu.dot_dimension_numbers<[1], [0], [0], [1], [0, 0, 1, 1], [], []>} : vector<8x32xf32>, vector<32x32xf32>, vector<8x32xf32> -> vector<8x32xf32>
    %76 = vector.broadcast %12 : vector<1x32xf32> to vector<8x32xf32>
    %77 = arith.addf %75, %76 : vector<8x32xf32>
    %78 = arith.addf %7, %77 : vector<8x32xf32>
    %c0_45 = arith.constant 0 : index
    %c0_46 = arith.constant 0 : index
    %79 = vector.load %arg6[%c0_45, %c0_46] : memref<1x32xf32, #tpu.memory_space<vmem>>, vector<1x32xf32>
    %c0_47 = arith.constant 0 : index
    %c0_48 = arith.constant 0 : index
    %80 = vector.load %arg7[%c0_47, %c0_48] : memref<1x32xf32, #tpu.memory_space<vmem>>, vector<1x32xf32>
    %cst_49 = arith.constant dense<0.000000e+00> : vector<8xf32>
    %81 = vector.multi_reduction <add>, %78, %cst_49 [1] : vector<8x32xf32> to vector<8xf32>
    %82 = vector.shape_cast %81 : vector<8xf32> to vector<8x1xf32>
    %cst_50 = arith.constant 3.200000e+01 : f32
    %83 = vector.broadcast %cst_50 : f32 to vector<8x1xf32>
    %84 = arith.divf %82, %83 : vector<8x1xf32>
    %85 = vector.broadcast %84 : vector<8x1xf32> to vector<8x32xf32>
    %86 = arith.subf %78, %85 : vector<8x32xf32>
    %87 = arith.mulf %86, %86 : vector<8x32xf32>
    %cst_51 = arith.constant dense<0.000000e+00> : vector<8xf32>
    %88 = vector.multi_reduction <add>, %87, %cst_51 [1] : vector<8x32xf32> to vector<8xf32>
    %89 = vector.shape_cast %88 : vector<8xf32> to vector<8x1xf32>
    %cst_52 = arith.constant 3.200000e+01 : f32
    %90 = vector.broadcast %cst_52 : f32 to vector<8x1xf32>
    %91 = arith.divf %89, %90 : vector<8x1xf32>
    %92 = vector.broadcast %84 : vector<8x1xf32> to vector<8x32xf32>
    %93 = arith.subf %78, %92 : vector<8x32xf32>
    %cst_53 = arith.constant 9.99999974E-6 : f32
    %94 = vector.broadcast %cst_53 : f32 to vector<8x1xf32>
    %95 = arith.addf %91, %94 : vector<8x1xf32>
    %96 = math.rsqrt %95 : vector<8x1xf32>
    %97 = vector.broadcast %96 : vector<8x1xf32> to vector<8x32xf32>
    %98 = arith.mulf %93, %97 : vector<8x32xf32>
    %99 = vector.broadcast %79 : vector<1x32xf32> to vector<8x32xf32>
    %100 = arith.mulf %98, %99 : vector<8x32xf32>
    %101 = vector.broadcast %80 : vector<1x32xf32> to vector<8x32xf32>
    %102 = arith.addf %100, %101 : vector<8x32xf32>
    %c0_54 = arith.constant 0 : index
    %c0_55 = arith.constant 0 : index
    %103 = vector.load %arg14[%c0_54, %c0_55] : memref<32x32xf32, #tpu.memory_space<vmem>>, vector<32x32xf32>
    %cst_56 = arith.constant dense<0.000000e+00> : vector<8x32xf32>
    %104 = tpu.matmul %102, %103, %cst_56 {dimension_numbers = #tpu.dot_dimension_numbers<[1], [0], [0], [1], [0, 0, 1, 1], [], []>} : vector<8x32xf32>, vector<32x32xf32>, vector<8x32xf32> -> vector<8x32xf32>
    %c0_57 = arith.constant 0 : index
    %c0_58 = arith.constant 0 : index
    %105 = vector.load %arg17[%c0_57, %c0_58] : memref<1x32xf32, #tpu.memory_space<vmem>>, vector<1x32xf32>
    %106 = vector.extract_strided_slice %104 {offsets = [0, 0], sizes = [8, 8], strides = [1, 1]} : vector<8x32xf32> to vector<8x8xf32>
    %c0_59 = arith.constant 0 : index
    %c0_60 = arith.constant 0 : index
    %107 = vector.load %arg27[%c0_59, %c0_60] : memref<8x64xf32, #tpu.memory_space<vmem>>, vector<8x8xf32>
    %c0_61 = arith.constant 0 : index
    %c32_62 = arith.constant 32 : index
    %108 = vector.load %arg27[%c0_61, %c32_62] : memref<8x64xf32, #tpu.memory_space<vmem>>, vector<8x8xf32>
    %cst_63 = arith.constant dense<0.000000e+00> : vector<8x8xf32>
    %109 = tpu.matmul %106, %107, %cst_63 {dimension_numbers = #tpu.dot_dimension_numbers<[1], [1], [0], [0], [0, 0, 1, 0], [], []>} : vector<8x8xf32>, vector<8x8xf32>, vector<8x8xf32> -> vector<8x8xf32>
    %cst_64 = arith.constant dense<0xFF800000> : vector<8xf32>
    %110 = vector.multi_reduction <maximumf>, %109, %cst_64 [1] : vector<8x8xf32> to vector<8xf32>
    %111 = vector.shape_cast %110 : vector<8xf32> to vector<8x1xf32>
    %112 = vector.broadcast %111 : vector<8x1xf32> to vector<8x8xf32>
    %113 = arith.subf %109, %112 : vector<8x8xf32>
    %114 = math.exp %113 : vector<8x8xf32>
    %cst_65 = arith.constant dense<0.000000e+00> : vector<8xf32>
    %115 = vector.multi_reduction <add>, %114, %cst_65 [1] : vector<8x8xf32> to vector<8xf32>
    %116 = vector.shape_cast %115 : vector<8xf32> to vector<8x1xf32>
    %117 = vector.broadcast %116 : vector<8x1xf32> to vector<8x8xf32>
    %118 = arith.divf %114, %117 : vector<8x8xf32>
    %cst_66 = arith.constant dense<0.000000e+00> : vector<8x8xf32>
    %119 = tpu.matmul %118, %108, %cst_66 {dimension_numbers = #tpu.dot_dimension_numbers<[1], [0], [0], [1], [0, 0, 1, 1], [], []>} : vector<8x8xf32>, vector<8x8xf32>, vector<8x8xf32> -> vector<8x8xf32>
    %c0_67 = arith.constant 0 : index
    %c0_68 = arith.constant 0 : index
    %120 = vector.load %arg28[%c0_67, %c0_68] : memref<8x32xf32, #tpu.memory_space<vmem>>, vector<8x8xf32>
    tpu.vector_store %arg28[%c0_67, %c0_68], %119 {strides = array<i32>} : memref<8x32xf32, #tpu.memory_space<vmem>>, vector<8x8xf32>,
    %121 = vector.extract_strided_slice %104 {offsets = [0, 8], sizes = [8, 8], strides = [1, 1]} : vector<8x32xf32> to vector<8x8xf32>
    %c0_69 = arith.constant 0 : index
    %c8_70 = arith.constant 8 : index
    %122 = vector.load %arg27[%c0_69, %c8_70] : memref<8x64xf32, #tpu.memory_space<vmem>>, vector<8x8xf32>
    %c0_71 = arith.constant 0 : index
    %c40_72 = arith.constant 40 : index
    %123 = vector.load %arg27[%c0_71, %c40_72] : memref<8x64xf32, #tpu.memory_space<vmem>>, vector<8x8xf32>
    %cst_73 = arith.constant dense<0.000000e+00> : vector<8x8xf32>
    %124 = tpu.matmul %121, %122, %cst_73 {dimension_numbers = #tpu.dot_dimension_numbers<[1], [1], [0], [0], [0, 0, 1, 0], [], []>} : vector<8x8xf32>, vector<8x8xf32>, vector<8x8xf32> -> vector<8x8xf32>
    %cst_74 = arith.constant dense<0xFF800000> : vector<8xf32>
    %125 = vector.multi_reduction <maximumf>, %124, %cst_74 [1] : vector<8x8xf32> to vector<8xf32>
    %126 = vector.shape_cast %125 : vector<8xf32> to vector<8x1xf32>
    %127 = vector.broadcast %126 : vector<8x1xf32> to vector<8x8xf32>
    %128 = arith.subf %124, %127 : vector<8x8xf32>
    %129 = math.exp %128 : vector<8x8xf32>
    %cst_75 = arith.constant dense<0.000000e+00> : vector<8xf32>
    %130 = vector.multi_reduction <add>, %129, %cst_75 [1] : vector<8x8xf32> to vector<8xf32>
    %131 = vector.shape_cast %130 : vector<8xf32> to vector<8x1xf32>
    %132 = vector.broadcast %131 : vector<8x1xf32> to vector<8x8xf32>
    %133 = arith.divf %129, %132 : vector<8x8xf32>
    %cst_76 = arith.constant dense<0.000000e+00> : vector<8x8xf32>
    %134 = tpu.matmul %133, %123, %cst_76 {dimension_numbers = #tpu.dot_dimension_numbers<[1], [0], [0], [1], [0, 0, 1, 1], [], []>} : vector<8x8xf32>, vector<8x8xf32>, vector<8x8xf32> -> vector<8x8xf32>
    %c0_77 = arith.constant 0 : index
    %c8_78 = arith.constant 8 : index
    %135 = vector.load %arg28[%c0_77, %c8_78] : memref<8x32xf32, #tpu.memory_space<vmem>>, vector<8x8xf32>
    tpu.vector_store %arg28[%c0_77, %c8_78], %134 {strides = array<i32>} : memref<8x32xf32, #tpu.memory_space<vmem>>, vector<8x8xf32>,
    %136 = vector.extract_strided_slice %104 {offsets = [0, 16], sizes = [8, 8], strides = [1, 1]} : vector<8x32xf32> to vector<8x8xf32>
    %c0_79 = arith.constant 0 : index
    %c16_80 = arith.constant 16 : index
    %137 = vector.load %arg27[%c0_79, %c16_80] : memref<8x64xf32, #tpu.memory_space<vmem>>, vector<8x8xf32>
    %c0_81 = arith.constant 0 : index
    %c48_82 = arith.constant 48 : index
    %138 = vector.load %arg27[%c0_81, %c48_82] : memref<8x64xf32, #tpu.memory_space<vmem>>, vector<8x8xf32>
    %cst_83 = arith.constant dense<0.000000e+00> : vector<8x8xf32>
    %139 = tpu.matmul %136, %137, %cst_83 {dimension_numbers = #tpu.dot_dimension_numbers<[1], [1], [0], [0], [0, 0, 1, 0], [], []>} : vector<8x8xf32>, vector<8x8xf32>, vector<8x8xf32> -> vector<8x8xf32>
    %cst_84 = arith.constant dense<0xFF800000> : vector<8xf32>
    %140 = vector.multi_reduction <maximumf>, %139, %cst_84 [1] : vector<8x8xf32> to vector<8xf32>
    %141 = vector.shape_cast %140 : vector<8xf32> to vector<8x1xf32>
    %142 = vector.broadcast %141 : vector<8x1xf32> to vector<8x8xf32>
    %143 = arith.subf %139, %142 : vector<8x8xf32>
    %144 = math.exp %143 : vector<8x8xf32>
    %cst_85 = arith.constant dense<0.000000e+00> : vector<8xf32>
    %145 = vector.multi_reduction <add>, %144, %cst_85 [1] : vector<8x8xf32> to vector<8xf32>
    %146 = vector.shape_cast %145 : vector<8xf32> to vector<8x1xf32>
    %147 = vector.broadcast %146 : vector<8x1xf32> to vector<8x8xf32>
    %148 = arith.divf %144, %147 : vector<8x8xf32>
    %cst_86 = arith.constant dense<0.000000e+00> : vector<8x8xf32>
    %149 = tpu.matmul %148, %138, %cst_86 {dimension_numbers = #tpu.dot_dimension_numbers<[1], [0], [0], [1], [0, 0, 1, 1], [], []>} : vector<8x8xf32>, vector<8x8xf32>, vector<8x8xf32> -> vector<8x8xf32>
    %c0_87 = arith.constant 0 : index
    %c16_88 = arith.constant 16 : index
    %150 = vector.load %arg28[%c0_87, %c16_88] : memref<8x32xf32, #tpu.memory_space<vmem>>, vector<8x8xf32>
    tpu.vector_store %arg28[%c0_87, %c16_88], %149 {strides = array<i32>} : memref<8x32xf32, #tpu.memory_space<vmem>>, vector<8x8xf32>,
    %151 = vector.extract_strided_slice %104 {offsets = [0, 24], sizes = [8, 8], strides = [1, 1]} : vector<8x32xf32> to vector<8x8xf32>
    %c0_89 = arith.constant 0 : index
    %c24_90 = arith.constant 24 : index
    %152 = vector.load %arg27[%c0_89, %c24_90] : memref<8x64xf32, #tpu.memory_space<vmem>>, vector<8x8xf32>
    %c0_91 = arith.constant 0 : index
    %c56_92 = arith.constant 56 : index
    %153 = vector.load %arg27[%c0_91, %c56_92] : memref<8x64xf32, #tpu.memory_space<vmem>>, vector<8x8xf32>
    %cst_93 = arith.constant dense<0.000000e+00> : vector<8x8xf32>
    %154 = tpu.matmul %151, %152, %cst_93 {dimension_numbers = #tpu.dot_dimension_numbers<[1], [1], [0], [0], [0, 0, 1, 0], [], []>} : vector<8x8xf32>, vector<8x8xf32>, vector<8x8xf32> -> vector<8x8xf32>
    %cst_94 = arith.constant dense<0xFF800000> : vector<8xf32>
    %155 = vector.multi_reduction <maximumf>, %154, %cst_94 [1] : vector<8x8xf32> to vector<8xf32>
    %156 = vector.shape_cast %155 : vector<8xf32> to vector<8x1xf32>
    %157 = vector.broadcast %156 : vector<8x1xf32> to vector<8x8xf32>
    %158 = arith.subf %154, %157 : vector<8x8xf32>
    %159 = math.exp %158 : vector<8x8xf32>
    %cst_95 = arith.constant dense<0.000000e+00> : vector<8xf32>
    %160 = vector.multi_reduction <add>, %159, %cst_95 [1] : vector<8x8xf32> to vector<8xf32>
    %161 = vector.shape_cast %160 : vector<8xf32> to vector<8x1xf32>
    %162 = vector.broadcast %161 : vector<8x1xf32> to vector<8x8xf32>
    %163 = arith.divf %159, %162 : vector<8x8xf32>
    %cst_96 = arith.constant dense<0.000000e+00> : vector<8x8xf32>
    %164 = tpu.matmul %163, %153, %cst_96 {dimension_numbers = #tpu.dot_dimension_numbers<[1], [0], [0], [1], [0, 0, 1, 1], [], []>} : vector<8x8xf32>, vector<8x8xf32>, vector<8x8xf32> -> vector<8x8xf32>
    %c0_97 = arith.constant 0 : index
    %c24_98 = arith.constant 24 : index
    %165 = vector.load %arg28[%c0_97, %c24_98] : memref<8x32xf32, #tpu.memory_space<vmem>>, vector<8x8xf32>
    tpu.vector_store %arg28[%c0_97, %c24_98], %164 {strides = array<i32>} : memref<8x32xf32, #tpu.memory_space<vmem>>, vector<8x8xf32>,
    %c0_99 = arith.constant 0 : index
    %c0_100 = arith.constant 0 : index
    %166 = vector.load %arg28[%c0_99, %c0_100] : memref<8x32xf32, #tpu.memory_space<vmem>>, vector<8x32xf32>
    %c0_101 = arith.constant 0 : index
    %c0_102 = arith.constant 0 : index
    %167 = vector.load %arg16[%c0_101, %c0_102] : memref<32x32xf32, #tpu.memory_space<vmem>>, vector<32x32xf32>
    %cst_103 = arith.constant dense<0.000000e+00> : vector<8x32xf32>
    %168 = tpu.matmul %166, %167, %cst_103 {dimension_numbers = #tpu.dot_dimension_numbers<[1], [0], [0], [1], [0, 0, 1, 1], [], []>} : vector<8x32xf32>, vector<32x32xf32>, vector<8x32xf32> -> vector<8x32xf32>
    %169 = vector.broadcast %105 : vector<1x32xf32> to vector<8x32xf32>
    %170 = arith.addf %168, %169 : vector<8x32xf32>
    %171 = arith.addf %78, %170 : vector<8x32xf32>
    %c0_104 = arith.constant 0 : index
    %c0_105 = arith.constant 0 : index
    %172 = vector.load %arg8[%c0_104, %c0_105] : memref<1x32xf32, #tpu.memory_space<vmem>>, vector<1x32xf32>
    %c0_106 = arith.constant 0 : index
    %c0_107 = arith.constant 0 : index
    %173 = vector.load %arg9[%c0_106, %c0_107] : memref<1x32xf32, #tpu.memory_space<vmem>>, vector<1x32xf32>
    %cst_108 = arith.constant dense<0.000000e+00> : vector<8xf32>
    %174 = vector.multi_reduction <add>, %171, %cst_108 [1] : vector<8x32xf32> to vector<8xf32>
    %175 = vector.shape_cast %174 : vector<8xf32> to vector<8x1xf32>
    %cst_109 = arith.constant 3.200000e+01 : f32
    %176 = vector.broadcast %cst_109 : f32 to vector<8x1xf32>
    %177 = arith.divf %175, %176 : vector<8x1xf32>
    %178 = vector.broadcast %177 : vector<8x1xf32> to vector<8x32xf32>
    %179 = arith.subf %171, %178 : vector<8x32xf32>
    %180 = arith.mulf %179, %179 : vector<8x32xf32>
    %cst_110 = arith.constant dense<0.000000e+00> : vector<8xf32>
    %181 = vector.multi_reduction <add>, %180, %cst_110 [1] : vector<8x32xf32> to vector<8xf32>
    %182 = vector.shape_cast %181 : vector<8xf32> to vector<8x1xf32>
    %cst_111 = arith.constant 3.200000e+01 : f32
    %183 = vector.broadcast %cst_111 : f32 to vector<8x1xf32>
    %184 = arith.divf %182, %183 : vector<8x1xf32>
    %185 = vector.broadcast %177 : vector<8x1xf32> to vector<8x32xf32>
    %186 = arith.subf %171, %185 : vector<8x32xf32>
    %cst_112 = arith.constant 9.99999974E-6 : f32
    %187 = vector.broadcast %cst_112 : f32 to vector<8x1xf32>
    %188 = arith.addf %184, %187 : vector<8x1xf32>
    %189 = math.rsqrt %188 : vector<8x1xf32>
    %190 = vector.broadcast %189 : vector<8x1xf32> to vector<8x32xf32>
    %191 = arith.mulf %186, %190 : vector<8x32xf32>
    %192 = vector.broadcast %172 : vector<1x32xf32> to vector<8x32xf32>
    %193 = arith.mulf %191, %192 : vector<8x32xf32>
    %194 = vector.broadcast %173 : vector<1x32xf32> to vector<8x32xf32>
    %195 = arith.addf %193, %194 : vector<8x32xf32>
    %c0_113 = arith.constant 0 : index
    %c0_114 = arith.constant 0 : index
    %196 = vector.load %arg18[%c0_113, %c0_114] : memref<32x128xf32, #tpu.memory_space<vmem>>, vector<32x128xf32>
    %cst_115 = arith.constant dense<0.000000e+00> : vector<8x128xf32>
    %197 = tpu.matmul %195, %196, %cst_115 {dimension_numbers = #tpu.dot_dimension_numbers<[1], [0], [0], [1], [0, 0, 1, 1], [], []>} : vector<8x32xf32>, vector<32x128xf32>, vector<8x128xf32> -> vector<8x128xf32>
    %c0_116 = arith.constant 0 : index
    %c0_117 = arith.constant 0 : index
    %198 = vector.load %arg19[%c0_116, %c0_117] : memref<1x128xf32, #tpu.memory_space<vmem>>, vector<1x128xf32>
    %199 = vector.broadcast %198 : vector<1x128xf32> to vector<8x128xf32>
    %200 = arith.addf %197, %199 : vector<8x128xf32>
    %c0_118 = arith.constant 0 : index
    %c0_119 = arith.constant 0 : index
    %201 = vector.load %arg20[%c0_118, %c0_119] : memref<32x128xf32, #tpu.memory_space<vmem>>, vector<32x128xf32>
    %cst_120 = arith.constant dense<0.000000e+00> : vector<8x128xf32>
    %202 = tpu.matmul %195, %201, %cst_120 {dimension_numbers = #tpu.dot_dimension_numbers<[1], [0], [0], [1], [0, 0, 1, 1], [], []>} : vector<8x32xf32>, vector<32x128xf32>, vector<8x128xf32> -> vector<8x128xf32>
    %c0_121 = arith.constant 0 : index
    %c0_122 = arith.constant 0 : index
    %203 = vector.load %arg21[%c0_121, %c0_122] : memref<1x128xf32, #tpu.memory_space<vmem>>, vector<1x128xf32>
    %204 = vector.broadcast %203 : vector<1x128xf32> to vector<8x128xf32>
    %205 = arith.addf %202, %204 : vector<8x128xf32>
    %cst_123 = arith.constant 5.000000e-01 : f32
    %206 = vector.broadcast %cst_123 : f32 to vector<8x128xf32>
    %207 = arith.mulf %206, %205 : vector<8x128xf32>
    %cst_124 = arith.constant 0.707106769 : f32
    %208 = vector.broadcast %cst_124 : f32 to vector<8x128xf32>
    %209 = arith.mulf %205, %208 : vector<8x128xf32>
    %210 = math.erf %209 : vector<8x128xf32>
    %cst_125 = arith.constant 1.000000e+00 : f32
    %211 = vector.broadcast %cst_125 : f32 to vector<8x128xf32>
    %212 = arith.addf %211, %210 : vector<8x128xf32>
    %213 = arith.mulf %207, %212 : vector<8x128xf32>
    %214 = arith.mulf %200, %213 : vector<8x128xf32>
    %c0_126 = arith.constant 0 : index
    %c0_127 = arith.constant 0 : index
    %215 = vector.load %arg22[%c0_126, %c0_127] : memref<128x32xf32, #tpu.memory_space<vmem>>, vector<128x32xf32>
    %cst_128 = arith.constant dense<0.000000e+00> : vector<8x32xf32>
    %216 = tpu.matmul %214, %215, %cst_128 {dimension_numbers = #tpu.dot_dimension_numbers<[1], [0], [0], [1], [0, 0, 1, 1], [], []>} : vector<8x128xf32>, vector<128x32xf32>, vector<8x32xf32> -> vector<8x32xf32>
    %c0_129 = arith.constant 0 : index
    %c0_130 = arith.constant 0 : index
    %217 = vector.load %arg23[%c0_129, %c0_130] : memref<1x32xf32, #tpu.memory_space<vmem>>, vector<1x32xf32>
    %218 = vector.broadcast %217 : vector<1x32xf32> to vector<8x32xf32>
    %219 = arith.addf %216, %218 : vector<8x32xf32>
    %220 = arith.addf %171, %219 : vector<8x32xf32>
    %c0_131 = arith.constant 0 : index
    %c0_132 = arith.constant 0 : index
    %c0_133 = arith.constant 0 : index
    %221 = vector.load %arg24[%c0_131, %c0_132, %c0_133] : memref<1x8x32xf32, #tpu.memory_space<vmem>>, vector<1x8x32xf32>
    %222 = vector.shape_cast %221 : vector<1x8x32xf32> to vector<8x32xf32>
    %223 = vector.shape_cast %220 : vector<8x32xf32> to vector<1x8x32xf32>
    tpu.vector_store %arg24[%c0_131, %c0_132, %c0_133], %223 {strides = array<i32>} : memref<1x8x32xf32, #tpu.memory_space<vmem>>, vector<1x8x32xf32>,
    return
  }
  func.func @transform_0(%arg0: i32, %arg1: i32) -> (i32, i32, i32) {
    %c0_i32 = arith.constant 0 : i32
    %c0_i32_0 = arith.constant 0 : i32
    %c0_i32_1 = arith.constant 0 : i32
    return %arg0, %c0_i32, %c0_i32_0 : i32, i32, i32
  }
  func.func @transform_1(%arg0: i32, %arg1: i32) -> (i32, i32, i32) {
    %c0_i32 = arith.constant 0 : i32
    %c0_i32_0 = arith.constant 0 : i32
    %c0_i32_1 = arith.constant 0 : i32
    return %arg0, %c0_i32, %c0_i32_0 : i32, i32, i32
  }
  func.func @transform_2(%arg0: i32, %arg1: i32) -> (i32, i32) {
    %c0_i32 = arith.constant 0 : i32
    %c0_i32_0 = arith.constant 0 : i32
    %c0_i32_1 = arith.constant 0 : i32
    return %c0_i32, %c0_i32_0 : i32, i32
  }
  func.func @transform_3(%arg0: i32, %arg1: i32) -> (i32, i32) {
    %c0_i32 = arith.constant 0 : i32
    %c0_i32_0 = arith.constant 0 : i32
    %c0_i32_1 = arith.constant 0 : i32
    return %c0_i32, %c0_i32_0 : i32, i32
  }
  func.func @transform_4(%arg0: i32, %arg1: i32) -> (i32, i32) {
    %c0_i32 = arith.constant 0 : i32
    %c0_i32_0 = arith.constant 0 : i32
    %c0_i32_1 = arith.constant 0 : i32
    return %c0_i32, %c0_i32_0 : i32, i32
  }
  func.func @transform_5(%arg0: i32, %arg1: i32) -> (i32, i32) {
    %c0_i32 = arith.constant 0 : i32
    %c0_i32_0 = arith.constant 0 : i32
    %c0_i32_1 = arith.constant 0 : i32
    return %c0_i32, %c0_i32_0 : i32, i32
  }
  func.func @transform_6(%arg0: i32, %arg1: i32) -> (i32, i32) {
    %c0_i32 = arith.constant 0 : i32
    %c0_i32_0 = arith.constant 0 : i32
    %c0_i32_1 = arith.constant 0 : i32
    return %c0_i32, %c0_i32_0 : i32, i32
  }
  func.func @transform_7(%arg0: i32, %arg1: i32) -> (i32, i32) {
    %c0_i32 = arith.constant 0 : i32
    %c0_i32_0 = arith.constant 0 : i32
    %c0_i32_1 = arith.constant 0 : i32
    return %c0_i32, %c0_i32_0 : i32, i32
  }
  func.func @transform_8(%arg0: i32, %arg1: i32) -> (i32, i32) {
    %c0_i32 = arith.constant 0 : i32
    %c0_i32_0 = arith.constant 0 : i32
    %c0_i32_1 = arith.constant 0 : i32
    return %c0_i32, %c0_i32_0 : i32, i32
  }
  func.func @transform_9(%arg0: i32, %arg1: i32) -> (i32, i32) {
    %c0_i32 = arith.constant 0 : i32
    %c0_i32_0 = arith.constant 0 : i32
    %c0_i32_1 = arith.constant 0 : i32
    return %c0_i32, %c0_i32_0 : i32, i32
  }
  func.func @transform_10(%arg0: i32, %arg1: i32) -> (i32, i32) {
    %c0_i32 = arith.constant 0 : i32
    %c0_i32_0 = arith.constant 0 : i32
    %c0_i32_1 = arith.constant 0 : i32
    return %c0_i32, %c0_i32_0 : i32, i32
  }
  func.func @transform_11(%arg0: i32, %arg1: i32) -> (i32, i32) {
    %c0_i32 = arith.constant 0 : i32
    %c0_i32_0 = arith.constant 0 : i32
    %c0_i32_1 = arith.constant 0 : i32
    return %c0_i32, %c0_i32_0 : i32, i32
  }
  func.func @transform_12(%arg0: i32, %arg1: i32) -> (i32, i32) {
    %c0_i32 = arith.constant 0 : i32
    %c0_i32_0 = arith.constant 0 : i32
    %c0_i32_1 = arith.constant 0 : i32
    return %c0_i32, %c0_i32_0 : i32, i32
  }
  func.func @transform_13(%arg0: i32, %arg1: i32) -> (i32, i32) {
    %c0_i32 = arith.constant 0 : i32
    %c0_i32_0 = arith.constant 0 : i32
    %c0_i32_1 = arith.constant 0 : i32
    return %c0_i32, %c0_i32_0 : i32, i32
  }
  func.func @transform_14(%arg0: i32, %arg1: i32) -> (i32, i32) {
    %c0_i32 = arith.constant 0 : i32
    %c0_i32_0 = arith.constant 0 : i32
    %c0_i32_1 = arith.constant 0 : i32
    return %c0_i32, %c0_i32_0 : i32, i32
  }
  func.func @transform_15(%arg0: i32, %arg1: i32) -> (i32, i32) {
    %c0_i32 = arith.constant 0 : i32
    %c0_i32_0 = arith.constant 0 : i32
    %c0_i32_1 = arith.constant 0 : i32
    return %c0_i32, %c0_i32_0 : i32, i32
  }
  func.func @transform_16(%arg0: i32, %arg1: i32) -> (i32, i32) {
    %c0_i32 = arith.constant 0 : i32
    %c0_i32_0 = arith.constant 0 : i32
    %c0_i32_1 = arith.constant 0 : i32
    return %c0_i32, %c0_i32_0 : i32, i32
  }
  func.func @transform_17(%arg0: i32, %arg1: i32) -> (i32, i32) {
    %c0_i32 = arith.constant 0 : i32
    %c0_i32_0 = arith.constant 0 : i32
    %c0_i32_1 = arith.constant 0 : i32
    return %c0_i32, %c0_i32_0 : i32, i32
  }
  func.func @transform_18(%arg0: i32, %arg1: i32) -> (i32, i32) {
    %c0_i32 = arith.constant 0 : i32
    %c0_i32_0 = arith.constant 0 : i32
    %c0_i32_1 = arith.constant 0 : i32
    return %c0_i32, %c0_i32_0 : i32, i32
  }
  func.func @transform_19(%arg0: i32, %arg1: i32) -> (i32, i32) {
    %c0_i32 = arith.constant 0 : i32
    %c0_i32_0 = arith.constant 0 : i32
    %c0_i32_1 = arith.constant 0 : i32
    return %c0_i32, %c0_i32_0 : i32, i32
  }
  func.func @transform_20(%arg0: i32, %arg1: i32) -> (i32, i32) {
    %c0_i32 = arith.constant 0 : i32
    %c0_i32_0 = arith.constant 0 : i32
    %c0_i32_1 = arith.constant 0 : i32
    return %c0_i32, %c0_i32_0 : i32, i32
  }
  func.func @transform_21(%arg0: i32, %arg1: i32) -> (i32, i32) {
    %c0_i32 = arith.constant 0 : i32
    %c0_i32_0 = arith.constant 0 : i32
    %c0_i32_1 = arith.constant 0 : i32
    return %c0_i32, %c0_i32_0 : i32, i32
  }
  func.func @transform_22(%arg0: i32, %arg1: i32) -> (i32, i32, i32) {
    %c0_i32 = arith.constant 0 : i32
    %c0_i32_0 = arith.constant 0 : i32
    return %arg0, %arg1, %c0_i32 : i32, i32, i32
  }
}

</mosaic_0001>

<llo_original>
// kernel: tpu_custom_call.1
$region0: #{tpu_custom_call.1}
  #allocation0 [shape = 'u32[]', space=smem, size = 0x4, offset = 0x4, fixed_abs, tag = 'smem constant byte address 0x4 - core index']
  #allocation1 [shape = 'u32[72,128]{1,0:T(1,128)}', space=vmem, size = 0x9000, scoped, tag = 'internal scratch']
  #allocation2 [shape = 'f32[8,32]{1,0:T(8,128)}', space=vmem, size = 0x1000, scoped, tag = 'scratch operand']
  #allocation3 [shape = 'f32[8,64]{1,0:T(8,128)}', space=vmem, size = 0x1000, scoped, tag = 'scratch operand']
  #allocation4 [shape = 'f32[8,64]{1,0:T(8,128)}', space=vmem, size = 0x1000, scoped, tag = 'scratch operand']
  #allocation5 [shape = 'f32[8,32]{1,0:T(8,128)}', space=vmem, size = 0x1000, scoped, tag = 'scratch operand']
  %s0 = inlined_call_operand.hbm [shape: f32[2,8,32], index: 0, kind: input, shape index: {}]
  %s1 = inlined_call_operand.hbm [shape: f32[2,8,32], index: 1, kind: input, shape index: {}]
  %s2 = inlined_call_operand.vmem [shape: f32[1,32], index: 2, kind: input, shape index: {}]
  %s3 = inlined_call_operand.hbm [shape: f32[1,32], index: 3, kind: input, shape index: {}]
  %s4 = inlined_call_operand.vmem [shape: f32[1,32], index: 4, kind: input, shape index: {}]
  %s5 = inlined_call_operand.vmem [shape: f32[1,32], index: 5, kind: input, shape index: {}]
  %s6 = inlined_call_operand.vmem [shape: f32[1,32], index: 6, kind: input, shape index: {}]
  %s7 = inlined_call_operand.vmem [shape: f32[1,32], index: 7, kind: input, shape index: {}]
  %s8 = inlined_call_operand.vmem [shape: f32[32,32], index: 8, kind: input, shape index: {}]
  %s9 = inlined_call_operand.vmem [shape: f32[32,64], index: 9, kind: input, shape index: {}]
  %s10 = inlined_call_operand.vmem [shape: f32[32,32], index: 10, kind: input, shape index: {}]
  %s11 = inlined_call_operand.vmem [shape: f32[1,32], index: 11, kind: input, shape index: {}]
  %s12 = inlined_call_operand.vmem [shape: f32[32,32], index: 12, kind: input, shape index: {}]
  %s13 = inlined_call_operand.vmem [shape: f32[32,64], index: 13, kind: input, shape index: {}]
  %s14 = inlined_call_operand.hbm [shape: f32[32,32], index: 14, kind: input, shape index: {}]
  %s15 = inlined_call_operand.vmem [shape: f32[1,32], index: 15, kind: input, shape index: {}]
  %s16 = inlined_call_operand.hbm [shape: f32[32,128], index: 16, kind: input, shape index: {}]
  %s17 = inlined_call_operand.vmem [shape: f32[1,128], index: 17, kind: input, shape index: {}]
  %s18 = inlined_call_operand.hbm [shape: f32[32,128], index: 18, kind: input, shape index: {}]
  %s19 = inlined_call_operand.vmem [shape: f32[1,128], index: 19, kind: input, shape index: {}]
  %s20 = inlined_call_operand.vmem [shape: f32[128,32], index: 20, kind: input, shape index: {}]
  %s21 = inlined_call_operand.vmem [shape: f32[1,32], index: 21, kind: input, shape index: {}]
  %s22 = inlined_call_operand.hbm [shape: f32[2,8,32], index: 22, kind: output, shape index: {}]
  %s23 = sld [smem:[#allocation0]]
  $region149: #{tpu_custom_call.1} parent=0
    _
  %s25 = ssub.s32 1, %s23
  %s26 = scalar_select 0, %s25, %s23
  $region1: #{tpu_custom_call.1} parent=0
    #allocation6 [shape = 'u8[4096]{0}', space=vmem, size = 0x1000, scoped, tag = 'input window, operand 0, single buffered']
    #allocation7 [shape = 's32[2]{0}', space=sflag, size = 0x8, scoped, tag = 'scoped memory for tpu_custom_call.1']
    #allocation8 [shape = 's32[2]{0}', space=sflag, size = 0x8, scoped, tag = 'scoped memory for tpu_custom_call.1']
    #allocation9 [shape = 'u8[4096]{0}', space=vmem, size = 0x1000, scoped, tag = 'input window, operand 1, single buffered']
    #allocation10 [shape = 's32[1]{0}', space=sflag, size = 0x4, scoped, tag = 'scoped memory for tpu_custom_call.1']
    #allocation11 [shape = 'u8[512]{0}', space=vmem, size = 0x400, scoped, tag = 'input window, operand 3, single buffered']
    #allocation12 [shape = 'u8[16384]{0}', space=vmem, size = 0x4000, scoped, tag = 'input window, operand 14, single buffered']
    #allocation13 [shape = 's32[1]{0}', space=sflag, size = 0x4, scoped, tag = 'scoped memory for tpu_custom_call.1']
    #allocation14 [shape = 'u8[16384]{0}', space=vmem, size = 0x4000, scoped, tag = 'input window, operand 16, single buffered']
    #allocation15 [shape = 'u8[16384]{0}', space=vmem, size = 0x4000, scoped, tag = 'input window, operand 18, single buffered']
    #allocation16 [shape = 's32[1]{0}', space=sflag, size = 0x4, scoped, tag = 'scoped memory for tpu_custom_call.1']
    #allocation17 [shape = 'u8[8192]{0}', space=vmem, size = 0x2000, scoped, tag = 'output window, operand 0']
    %27 = vsyncpa [#allocation7], 0
    %28 = vsyncpa [#allocation10], 0
    %29 = vsyncpa [#allocation13], 0
    %30 = vsyncpa [#allocation16], 0
    %31 = vsyncpa [#allocation8], 0
    %s32 = scalar_lea.sflag [#allocation8], 1
    %33 = vsyncpa %s32, 0
    loop: start=0, step=1, limit=4
    $region2: #{tpu_custom_call.1} parent=1 // loop_pre_header
      _
    $region3: #{tpu_custom_call.1} parent=1 // loop_header
      %s35 = sphi 0, %s39
      %p36 = scmp.ge.s32.totalorder %s35, 4
      %s42 = sphi 0, %s54
      %s43 = sphi 0, %s50
      %s44 = sphi 0, %s42
      %s45 = sphi 0, %s43
      %s46 = sphi 0, %s44
      %s47 = sphi 0, %s45
      %s57 = sphi 0, %s59
      %s60 = sphi 0, %s57
      %s61 = sphi 0, %s60
      %s77 = sphi 0, %s61
      %s83 = sphi 0, %s85
      %s86 = sphi 0, %s83
      %s87 = sphi 0, %s86
      %s103 = sphi 0, %s87
      %s107 = sphi 0, %s107
      %s109 = sphi 0, %s107
      %s110 = sphi 0, %s109
      %s124 = sphi 0, %s110
      %s128 = sphi 0, %s128
      %s130 = sphi 0, %s128
      %s131 = sphi 0, %s130
      %s145 = sphi 0, %s131
      %s149 = sphi 0, %s149
      %s151 = sphi 0, %s149
      %s152 = sphi 0, %s151
      %s166 = sphi 0, %s152
      %s170 = sphi 0, %s170
      %s172 = sphi 0, %s170
      %s173 = sphi 0, %s172
      %s187 = sphi 0, %s173
      %s191 = sphi 0, %s191
      %s193 = sphi 0, %s191
      %s194 = sphi 0, %s193
      %s208 = sphi 0, %s194
      %s212 = sphi 0, %s212
      %s214 = sphi 0, %s212
      %s215 = sphi 0, %s214
      %s229 = sphi 0, %s215
      %s233 = sphi 0, %s233
      %s235 = sphi 0, %s233
      %s236 = sphi 0, %s235
      %s250 = sphi 0, %s236
      %s254 = sphi 0, %s254
      %s256 = sphi 0, %s254
      %s257 = sphi 0, %s256
      %s271 = sphi 0, %s257
      %s275 = sphi 0, %s275
      %s277 = sphi 0, %s275
      %s278 = sphi 0, %s277
      %s292 = sphi 0, %s278
      %s296 = sphi 0, %s296
      %s298 = sphi 0, %s296
      %s299 = sphi 0, %s298
      %s313 = sphi 0, %s299
      %s317 = sphi 0, %s317
      %s319 = sphi 0, %s317
      %s320 = sphi 0, %s319
      %s334 = sphi 0, %s320
      %s338 = sphi 0, %s338
      %s340 = sphi 0, %s338
      %s341 = sphi 0, %s340
      %s355 = sphi 0, %s341
      %s359 = sphi 0, %s359
      %s361 = sphi 0, %s359
      %s362 = sphi 0, %s361
      %s376 = sphi 0, %s362
      %s380 = sphi 0, %s380
      %s382 = sphi 0, %s380
      %s383 = sphi 0, %s382
      %s397 = sphi 0, %s383
      %s401 = sphi 0, %s401
      %s403 = sphi 0, %s401
      %s404 = sphi 0, %s403
      %s418 = sphi 0, %s404
      %s422 = sphi 0, %s422
      %s424 = sphi 0, %s422
      %s425 = sphi 0, %s424
      %s439 = sphi 0, %s425
      %s443 = sphi 0, %s443
      %s445 = sphi 0, %s443
      %s446 = sphi 0, %s445
      %s460 = sphi 0, %s446
      %s464 = sphi 0, %s464
      %s466 = sphi 0, %s464
      %s467 = sphi 0, %s466
      %s481 = sphi 0, %s467
      %s485 = sphi 0, %s485
      %s487 = sphi 0, %s485
      %s488 = sphi 0, %s487
      %s502 = sphi 0, %s488
      %s506 = sphi 0, %s506
      %s508 = sphi 0, %s506
      %s509 = sphi 0, %s508
      %s523 = sphi 0, %s509
      %s531 = sphi 0, %s533
      %s534 = sphi 0, %s531
      %s535 = sphi 0, %s534
      %s551 = sphi 0, %s535
    $region4: #{tpu_custom_call.1} parent=1 // loop_header_branch
      %38 = sbr.rel (%p36) target = $region8
    $region5: #{tpu_custom_call.1} parent=1 // loop_body
      %s40 = ssub.s32 %s35, 1
      %s41 = ssub.s32 %s35, 2
      %s48 = sadd.s32 1, %s43
      %p49 = scmp.ge.s32.totalorder %s48, 1
      %s50 = scalar_select %p49, 0, %s48
      %s51 = sadd.s32 1, %s42
      %s52 = scalar_select %p49, %s51, %s42
      %p53 = scmp.ge.s32.totalorder %s52, 2
      %s54 = scalar_select %p53, 0, %s52
      %s55 = ssub.s32 %s42, %s54
      %p56 = scmp.eq.s32.totalorder %s55, 0
      %s58 = sadd.s32 %s57, 1
      %s59 = scalar_select %p56, %s57, %s58
      %p62 = pneg %p56
      %p63 = scmp.eq.s32.totalorder %s35, 1
      %p64 = por %p62, %p63
      %p65 = scmp.ne.s32.totalorder %s57, %s60
      %p66 = scmp.eq.s32.totalorder %s35, 0
      %p67 = por %p65, %p66
      %p68 = scmp.ne.s32.totalorder %s57, %s60
      %p69 = scmp.eq.s32.totalorder %s40, 1
      %p70 = por %p68, %p69
      %p71 = scmp.ne.s32.totalorder %s60, %s61
      %p72 = scmp.eq.s32.totalorder %s40, 0
      %p73 = por %p71, %p72
      %p74 = scmp.ne.s32.totalorder %s60, %s61
      %p75 = scmp.eq.s32.totalorder %s41, 1
      %p76 = por %p74, %p75
      %p78 = scmp.ne.s32.totalorder %s61, %s77
      %p79 = scmp.eq.s32.totalorder %s41, 0
      %p80 = por %p78, %p79
      %s81 = ssub.s32 %s42, %s54
      %p82 = scmp.eq.s32.totalorder %s81, 0
      %s84 = sadd.s32 %s83, 1
      %s85 = scalar_select %p82, %s83, %s84
      %p88 = pneg %p82
      %p89 = scmp.eq.s32.totalorder %s35, 1
      %p90 = por %p88, %p89
      %p91 = scmp.ne.s32.totalorder %s83, %s86
      %p92 = scmp.eq.s32.totalorder %s35, 0
      %p93 = por %p91, %p92
      %p94 = scmp.ne.s32.totalorder %s83, %s86
      %p95 = scmp.eq.s32.totalorder %s40, 1
      %p96 = por %p94, %p95
      %p97 = scmp.ne.s32.totalorder %s86, %s87
      %p98 = scmp.eq.s32.totalorder %s40, 0
      %p99 = por %p97, %p98
      %p100 = scmp.ne.s32.totalorder %s86, %s87
      %p101 = scmp.eq.s32.totalorder %s41, 1
      %p102 = por %p100, %p101
      %p104 = scmp.ne.s32.totalorder %s87, %s103
      %p105 = scmp.eq.s32.totalorder %s41, 0
      %p106 = por %p104, %p105
      %s108 = sadd.s32 %s107, 1
      %p111 = scmp.eq.s32.totalorder %s35, 1
      %p112 = scmp.ne.s32.totalorder %s107, %s109
      %p113 = scmp.eq.s32.totalorder %s35, 0
      %p114 = por %p112, %p113
      %p115 = scmp.ne.s32.totalorder %s107, %s109
      %p116 = scmp.eq.s32.totalorder %s40, 1
      %p117 = por %p115, %p116
      %p118 = scmp.ne.s32.totalorder %s109, %s110
      %p119 = scmp.eq.s32.totalorder %s40, 0
      %p120 = por %p118, %p119
      %p121 = scmp.ne.s32.totalorder %s109, %s110
      %p122 = scmp.eq.s32.totalorder %s41, 1
      %p123 = por %p121, %p122
      %p125 = scmp.ne.s32.totalorder %s110, %s124
      %p126 = scmp.eq.s32.totalorder %s41, 0
      %p127 = por %p125, %p126
      %s129 = sadd.s32 %s128, 1
      %p132 = scmp.eq.s32.totalorder %s35, 1
      %p133 = scmp.ne.s32.totalorder %s128, %s130
      %p134 = scmp.eq.s32.totalorder %s35, 0
      %p135 = por %p133, %p134
      %p136 = scmp.ne.s32.totalorder %s128, %s130
      %p137 = scmp.eq.s32.totalorder %s40, 1
      %p138 = por %p136, %p137
      %p139 = scmp.ne.s32.totalorder %s130, %s131
      %p140 = scmp.eq.s32.totalorder %s40, 0
      %p141 = por %p139, %p140
      %p142 = scmp.ne.s32.totalorder %s130, %s131
      %p143 = scmp.eq.s32.totalorder %s41, 1
      %p144 = por %p142, %p143
      %p146 = scmp.ne.s32.totalorder %s131, %s145
      %p147 = scmp.eq.s32.totalorder %s41, 0
      %p148 = por %p146, %p147
      %s150 = sadd.s32 %s149, 1
      %p153 = scmp.eq.s32.totalorder %s35, 1
      %p154 = scmp.ne.s32.totalorder %s149, %s151
      %p155 = scmp.eq.s32.totalorder %s35, 0
      %p156 = por %p154, %p155
      %p157 = scmp.ne.s32.totalorder %s149, %s151
      %p158 = scmp.eq.s32.totalorder %s40, 1
      %p159 = por %p157, %p158
      %p160 = scmp.ne.s32.totalorder %s151, %s152
      %p161 = scmp.eq.s32.totalorder %s40, 0
      %p162 = por %p160, %p161
      %p163 = scmp.ne.s32.totalorder %s151, %s152
      %p164 = scmp.eq.s32.totalorder %s41, 1
      %p165 = por %p163, %p164
      %p167 = scmp.ne.s32.totalorder %s152, %s166
      %p168 = scmp.eq.s32.totalorder %s41, 0
      %p169 = por %p167, %p168
      %s171 = sadd.s32 %s170, 1
      %p174 = scmp.eq.s32.totalorder %s35, 1
      %p175 = scmp.ne.s32.totalorder %s170, %s172
      %p176 = scmp.eq.s32.totalorder %s35, 0
      %p177 = por %p175, %p176
      %p178 = scmp.ne.s32.totalorder %s170, %s172
      %p179 = scmp.eq.s32.totalorder %s40, 1
      %p180 = por %p178, %p179
      %p181 = scmp.ne.s32.totalorder %s172, %s173
      %p182 = scmp.eq.s32.totalorder %s40, 0
      %p183 = por %p181, %p182
      %p184 = scmp.ne.s32.totalorder %s172, %s173
      %p185 = scmp.eq.s32.totalorder %s41, 1
      %p186 = por %p184, %p185
      %p188 = scmp.ne.s32.totalorder %s173, %s187
      %p189 = scmp.eq.s32.totalorder %s41, 0
      %p190 = por %p188, %p189
      %s192 = sadd.s32 %s191, 1
      %p195 = scmp.eq.s32.totalorder %s35, 1
      %p196 = scmp.ne.s32.totalorder %s191, %s193
      %p197 = scmp.eq.s32.totalorder %s35, 0
      %p198 = por %p196, %p197
      %p199 = scmp.ne.s32.totalorder %s191, %s193
      %p200 = scmp.eq.s32.totalorder %s40, 1
      %p201 = por %p199, %p200
      %p202 = scmp.ne.s32.totalorder %s193, %s194
      %p203 = scmp.eq.s32.totalorder %s40, 0
      %p204 = por %p202, %p203
      %p205 = scmp.ne.s32.totalorder %s193, %s194
      %p206 = scmp.eq.s32.totalorder %s41, 1
      %p207 = por %p205, %p206
      %p209 = scmp.ne.s32.totalorder %s194, %s208
      %p210 = scmp.eq.s32.totalorder %s41, 0
      %p211 = por %p209, %p210
      %s213 = sadd.s32 %s212, 1
      %p216 = scmp.eq.s32.totalorder %s35, 1
      %p217 = scmp.ne.s32.totalorder %s212, %s214
      %p218 = scmp.eq.s32.totalorder %s35, 0
      %p219 = por %p217, %p218
      %p220 = scmp.ne.s32.totalorder %s212, %s214
      %p221 = scmp.eq.s32.totalorder %s40, 1
      %p222 = por %p220, %p221
      %p223 = scmp.ne.s32.totalorder %s214, %s215
      %p224 = scmp.eq.s32.totalorder %s40, 0
      %p225 = por %p223, %p224
      %p226 = scmp.ne.s32.totalorder %s214, %s215
      %p227 = scmp.eq.s32.totalorder %s41, 1
      %p228 = por %p226, %p227
      %p230 = scmp.ne.s32.totalorder %s215, %s229
      %p231 = scmp.eq.s32.totalorder %s41, 0
      %p232 = por %p230, %p231
      %s234 = sadd.s32 %s233, 1
      %p237 = scmp.eq.s32.totalorder %s35, 1
      %p238 = scmp.ne.s32.totalorder %s233, %s235
      %p239 = scmp.eq.s32.totalorder %s35, 0
      %p240 = por %p238, %p239
      %p241 = scmp.ne.s32.totalorder %s233, %s235
      %p242 = scmp.eq.s32.totalorder %s40, 1
      %p243 = por %p241, %p242
      %p244 = scmp.ne.s32.totalorder %s235, %s236
      %p245 = scmp.eq.s32.totalorder %s40, 0
      %p246 = por %p244, %p245
      %p247 = scmp.ne.s32.totalorder %s235, %s236
      %p248 = scmp.eq.s32.totalorder %s41, 1
      %p249 = por %p247, %p248
      %p251 = scmp.ne.s32.totalorder %s236, %s250
      %p252 = scmp.eq.s32.totalorder %s41, 0
      %p253 = por %p251, %p252
      %s255 = sadd.s32 %s254, 1
      %p258 = scmp.eq.s32.totalorder %s35, 1
      %p259 = scmp.ne.s32.totalorder %s254, %s256
      %p260 = scmp.eq.s32.totalorder %s35, 0
      %p261 = por %p259, %p260
      %p262 = scmp.ne.s32.totalorder %s254, %s256
      %p263 = scmp.eq.s32.totalorder %s40, 1
      %p264 = por %p262, %p263
      %p265 = scmp.ne.s32.totalorder %s256, %s257
      %p266 = scmp.eq.s32.totalorder %s40, 0
      %p267 = por %p265, %p266
      %p268 = scmp.ne.s32.totalorder %s256, %s257
      %p269 = scmp.eq.s32.totalorder %s41, 1
      %p270 = por %p268, %p269
      %p272 = scmp.ne.s32.totalorder %s257, %s271
      %p273 = scmp.eq.s32.totalorder %s41, 0
      %p274 = por %p272, %p273
      %s276 = sadd.s32 %s275, 1
      %p279 = scmp.eq.s32.totalorder %s35, 1
      %p280 = scmp.ne.s32.totalorder %s275, %s277
      %p281 = scmp.eq.s32.totalorder %s35, 0
      %p282 = por %p280, %p281
      %p283 = scmp.ne.s32.totalorder %s275, %s277
      %p284 = scmp.eq.s32.totalorder %s40, 1
      %p285 = por %p283, %p284
      %p286 = scmp.ne.s32.totalorder %s277, %s278
      %p287 = scmp.eq.s32.totalorder %s40, 0
      %p288 = por %p286, %p287
      %p289 = scmp.ne.s32.totalorder %s277, %s278
      %p290 = scmp.eq.s32.totalorder %s41, 1
      %p291 = por %p289, %p290
      %p293 = scmp.ne.s32.totalorder %s278, %s292
      %p294 = scmp.eq.s32.totalorder %s41, 0
      %p295 = por %p293, %p294
      %s297 = sadd.s32 %s296, 1
      %p300 = scmp.eq.s32.totalorder %s35, 1
      %p301 = scmp.ne.s32.totalorder %s296, %s298
      %p302 = scmp.eq.s32.totalorder %s35, 0
      %p303 = por %p301, %p302
      %p304 = scmp.ne.s32.totalorder %s296, %s298
      %p305 = scmp.eq.s32.totalorder %s40, 1
      %p306 = por %p304, %p305
      %p307 = scmp.ne.s32.totalorder %s298, %s299
      %p308 = scmp.eq.s32.totalorder %s40, 0
      %p309 = por %p307, %p308
      %p310 = scmp.ne.s32.totalorder %s298, %s299
      %p311 = scmp.eq.s32.totalorder %s41, 1
      %p312 = por %p310, %p311
      %p314 = scmp.ne.s32.totalorder %s299, %s313
      %p315 = scmp.eq.s32.totalorder %s41, 0
      %p316 = por %p314, %p315
      %s318 = sadd.s32 %s317, 1
      %p321 = scmp.eq.s32.totalorder %s35, 1
      %p322 = scmp.ne.s32.totalorder %s317, %s319
      %p323 = scmp.eq.s32.totalorder %s35, 0
      %p324 = por %p322, %p323
      %p325 = scmp.ne.s32.totalorder %s317, %s319
      %p326 = scmp.eq.s32.totalorder %s40, 1
      %p327 = por %p325, %p326
      %p328 = scmp.ne.s32.totalorder %s319, %s320
      %p329 = scmp.eq.s32.totalorder %s40, 0
      %p330 = por %p328, %p329
      %p331 = scmp.ne.s32.totalorder %s319, %s320
      %p332 = scmp.eq.s32.totalorder %s41, 1
      %p333 = por %p331, %p332
      %p335 = scmp.ne.s32.totalorder %s320, %s334
      %p336 = scmp.eq.s32.totalorder %s41, 0
      %p337 = por %p335, %p336
      %s339 = sadd.s32 %s338, 1
      %p342 = scmp.eq.s32.totalorder %s35, 1
      %p343 = scmp.ne.s32.totalorder %s338, %s340
      %p344 = scmp.eq.s32.totalorder %s35, 0
      %p345 = por %p343, %p344
      %p346 = scmp.ne.s32.totalorder %s338, %s340
      %p347 = scmp.eq.s32.totalorder %s40, 1
      %p348 = por %p346, %p347
      %p349 = scmp.ne.s32.totalorder %s340, %s341
      %p350 = scmp.eq.s32.totalorder %s40, 0
      %p351 = por %p349, %p350
      %p352 = scmp.ne.s32.totalorder %s340, %s341
      %p353 = scmp.eq.s32.totalorder %s41, 1
      %p354 = por %p352, %p353
      %p356 = scmp.ne.s32.totalorder %s341, %s355
      %p357 = scmp.eq.s32.totalorder %s41, 0
      %p358 = por %p356, %p357
      %s360 = sadd.s32 %s359, 1
      %p363 = scmp.eq.s32.totalorder %s35, 1
      %p364 = scmp.ne.s32.totalorder %s359, %s361
      %p365 = scmp.eq.s32.totalorder %s35, 0
      %p366 = por %p364, %p365
      %p367 = scmp.ne.s32.totalorder %s359, %s361
      %p368 = scmp.eq.s32.totalorder %s40, 1
      %p369 = por %p367, %p368
      %p370 = scmp.ne.s32.totalorder %s361, %s362
      %p371 = scmp.eq.s32.totalorder %s40, 0
      %p372 = por %p370, %p371
      %p373 = scmp.ne.s32.totalorder %s361, %s362
      %p374 = scmp.eq.s32.totalorder %s41, 1
      %p375 = por %p373, %p374
      %p377 = scmp.ne.s32.totalorder %s362, %s376
      %p378 = scmp.eq.s32.totalorder %s41, 0
      %p379 = por %p377, %p378
      %s381 = sadd.s32 %s380, 1
      %p384 = scmp.eq.s32.totalorder %s35, 1
      %p385 = scmp.ne.s32.totalorder %s380, %s382
      %p386 = scmp.eq.s32.totalorder %s35, 0
      %p387 = por %p385, %p386
      %p388 = scmp.ne.s32.totalorder %s380, %s382
      %p389 = scmp.eq.s32.totalorder %s40, 1
      %p390 = por %p388, %p389
      %p391 = scmp.ne.s32.totalorder %s382, %s383
      %p392 = scmp.eq.s32.totalorder %s40, 0
      %p393 = por %p391, %p392
      %p394 = scmp.ne.s32.totalorder %s382, %s383
      %p395 = scmp.eq.s32.totalorder %s41, 1
      %p396 = por %p394, %p395
      %p398 = scmp.ne.s32.totalorder %s383, %s397
      %p399 = scmp.eq.s32.totalorder %s41, 0
      %p400 = por %p398, %p399
      %s402 = sadd.s32 %s401, 1
      %p405 = scmp.eq.s32.totalorder %s35, 1
      %p406 = scmp.ne.s32.totalorder %s401, %s403
      %p407 = scmp.eq.s32.totalorder %s35, 0
      %p408 = por %p406, %p407
      %p409 = scmp.ne.s32.totalorder %s401, %s403
      %p410 = scmp.eq.s32.totalorder %s40, 1
      %p411 = por %p409, %p410
      %p412 = scmp.ne.s32.totalorder %s403, %s404
      %p413 = scmp.eq.s32.totalorder %s40, 0
      %p414 = por %p412, %p413
      %p415 = scmp.ne.s32.totalorder %s403, %s404
      %p416 = scmp.eq.s32.totalorder %s41, 1
      %p417 = por %p415, %p416
      %p419 = scmp.ne.s32.totalorder %s404, %s418
      %p420 = scmp.eq.s32.totalorder %s41, 0
      %p421 = por %p419, %p420
      %s423 = sadd.s32 %s422, 1
      %p426 = scmp.eq.s32.totalorder %s35, 1
      %p427 = scmp.ne.s32.totalorder %s422, %s424
      %p428 = scmp.eq.s32.totalorder %s35, 0
      %p429 = por %p427, %p428
      %p430 = scmp.ne.s32.totalorder %s422, %s424
      %p431 = scmp.eq.s32.totalorder %s40, 1
      %p432 = por %p430, %p431
      %p433 = scmp.ne.s32.totalorder %s424, %s425
      %p434 = scmp.eq.s32.totalorder %s40, 0
      %p435 = por %p433, %p434
      %p436 = scmp.ne.s32.totalorder %s424, %s425
      %p437 = scmp.eq.s32.totalorder %s41, 1
      %p438 = por %p436, %p437
      %p440 = scmp.ne.s32.totalorder %s425, %s439
      %p441 = scmp.eq.s32.totalorder %s41, 0
      %p442 = por %p440, %p441
      %s444 = sadd.s32 %s443, 1
      %p447 = scmp.eq.s32.totalorder %s35, 1
      %p448 = scmp.ne.s32.totalorder %s443, %s445
      %p449 = scmp.eq.s32.totalorder %s35, 0
      %p450 = por %p448, %p449
      %p451 = scmp.ne.s32.totalorder %s443, %s445
      %p452 = scmp.eq.s32.totalorder %s40, 1
      %p453 = por %p451, %p452
      %p454 = scmp.ne.s32.totalorder %s445, %s446
      %p455 = scmp.eq.s32.totalorder %s40, 0
      %p456 = por %p454, %p455
      %p457 = scmp.ne.s32.totalorder %s445, %s446
      %p458 = scmp.eq.s32.totalorder %s41, 1
      %p459 = por %p457, %p458
      %p461 = scmp.ne.s32.totalorder %s446, %s460
      %p462 = scmp.eq.s32.totalorder %s41, 0
      %p463 = por %p461, %p462
      %s465 = sadd.s32 %s464, 1
      %p468 = scmp.eq.s32.totalorder %s35, 1
      %p469 = scmp.ne.s32.totalorder %s464, %s466
      %p470 = scmp.eq.s32.totalorder %s35, 0
      %p471 = por %p469, %p470
      %p472 = scmp.ne.s32.totalorder %s464, %s466
      %p473 = scmp.eq.s32.totalorder %s40, 1
      %p474 = por %p472, %p473
      %p475 = scmp.ne.s32.totalorder %s466, %s467
      %p476 = scmp.eq.s32.totalorder %s40, 0
      %p477 = por %p475, %p476
      %p478 = scmp.ne.s32.totalorder %s466, %s467
      %p479 = scmp.eq.s32.totalorder %s41, 1
      %p480 = por %p478, %p479
      %p482 = scmp.ne.s32.totalorder %s467, %s481
      %p483 = scmp.eq.s32.totalorder %s41, 0
      %p484 = por %p482, %p483
      %s486 = sadd.s32 %s485, 1
      %p489 = scmp.eq.s32.totalorder %s35, 1
      %p490 = scmp.ne.s32.totalorder %s485, %s487
      %p491 = scmp.eq.s32.totalorder %s35, 0
      %p492 = por %p490, %p491
      %p493 = scmp.ne.s32.totalorder %s485, %s487
      %p494 = scmp.eq.s32.totalorder %s40, 1
      %p495 = por %p493, %p494
      %p496 = scmp.ne.s32.totalorder %s487, %s488
      %p497 = scmp.eq.s32.totalorder %s40, 0
      %p498 = por %p496, %p497
      %p499 = scmp.ne.s32.totalorder %s487, %s488
      %p500 = scmp.eq.s32.totalorder %s41, 1
      %p501 = por %p499, %p500
      %p503 = scmp.ne.s32.totalorder %s488, %s502
      %p504 = scmp.eq.s32.totalorder %s41, 0
      %p505 = por %p503, %p504
      %s507 = sadd.s32 %s506, 1
      %p510 = scmp.eq.s32.totalorder %s35, 1
      %p511 = scmp.ne.s32.totalorder %s506, %s508
      %p512 = scmp.eq.s32.totalorder %s35, 0
      %p513 = por %p511, %p512
      %p514 = scmp.ne.s32.totalorder %s506, %s508
      %p515 = scmp.eq.s32.totalorder %s40, 1
      %p516 = por %p514, %p515
      %p517 = scmp.ne.s32.totalorder %s508, %s509
      %p518 = scmp.eq.s32.totalorder %s40, 0
      %p519 = por %p517, %p518
      %p520 = scmp.ne.s32.totalorder %s508, %s509
      %p521 = scmp.eq.s32.totalorder %s41, 1
      %p522 = por %p520, %p521
      %p524 = scmp.ne.s32.totalorder %s509, %s523
      %p525 = scmp.eq.s32.totalorder %s41, 0
      %p526 = por %p524, %p525
      %s527 = ssub.s32 %s42, %s54
      %s528 = ssub.s32 %s43, %s50
      %s529 = sor.u32 %s527, %s528
      %p530 = scmp.eq.s32.totalorder %s529, 0
      %s532 = sadd.s32 %s531, 1
      %s533 = scalar_select %p530, %s531, %s532
      %p536 = pneg %p530
      %p537 = scmp.eq.s32.totalorder %s35, 1
      %p538 = por %p536, %p537
      %p539 = scmp.ne.s32.totalorder %s531, %s534
      %p540 = scmp.eq.s32.totalorder %s35, 0
      %p541 = por %p539, %p540
      %p542 = scmp.ne.s32.totalorder %s531, %s534
      %p543 = scmp.eq.s32.totalorder %s40, 1
      %p544 = por %p542, %p543
      %p545 = scmp.ne.s32.totalorder %s534, %s535
      %p546 = scmp.eq.s32.totalorder %s40, 0
      %p547 = por %p545, %p546
      %p548 = scmp.ne.s32.totalorder %s534, %s535
      %p549 = scmp.eq.s32.totalorder %s41, 1
      %p550 = por %p548, %p549
      %p552 = scmp.ne.s32.totalorder %s535, %s551
      %p553 = scmp.eq.s32.totalorder %s41, 0
      %p554 = por %p552, %p553
      %p555 = scmp.le.s32.totalorder 1, %s35
      %p556 = scmp.lt.s32.totalorder %s35, 3
      %p557 = pnand %p555, %p556
      %p558 = pneg %p557
      // Predicated region
      $region9: #{tpu_custom_call.1} parent=5 // pred_check
        _
      $region10: #{tpu_custom_call.1} parent=5 // pred_check_branch
        %560 = sbr.rel (%p557) target = $region12
      $region11: #{tpu_custom_call.1} parent=5 // pred_region
        %s561 = ssub.s32 %s35, 1
        // Predicated region
        $region13: #{tpu_custom_call.1} parent=11 // pred_check
          %p562 = pneg %p73
        $region14: #{tpu_custom_call.1} parent=11 // pred_check_branch
          %564 = sbr.rel (%p562) target = $region16
        $region15: #{tpu_custom_call.1} parent=11 // pred_region
          %566 = vsyncadd [#allocation7], 0
          %s567 = smul.addr %s44, 8
          %s568 = scalar_lea.hbm %s0, %s567
          %s570 = sshll.u32 %s568, 4
          %s571 = int_to_ptr.hbm [resolvable:$true] %s570
          %s572 = sshll.u32 [#allocation6], 4
          %s573 = int_to_ptr.vmem [resolvable:$true] %s572
          %575 = dma.hbm_to_vmem [thread:$0]  %s571, 128, %s573, [#allocation7]
        $region16: #{tpu_custom_call.1} parent=11 // pred_fallthru
          _
        // Predicated region
        $region17: #{tpu_custom_call.1} parent=11 // pred_check
          %p576 = pneg %p99
        $region18: #{tpu_custom_call.1} parent=11 // pred_check_branch
          %578 = sbr.rel (%p576) target = $region20
        $region19: #{tpu_custom_call.1} parent=11 // pred_region
          %580 = vsyncadd [#allocation10], 0
          %s581 = smul.addr %s44, 8
          %s582 = scalar_lea.hbm %s1, %s581
          %s584 = sshll.u32 %s582, 4
          %s585 = int_to_ptr.hbm [resolvable:$true] %s584
          %s586 = sshll.u32 [#allocation9], 4
          %s587 = int_to_ptr.vmem [resolvable:$true] %s586
          %589 = dma.hbm_to_vmem [thread:$0]  %s585, 128, %s587, [#allocation10]
        $region20: #{tpu_custom_call.1} parent=11 // pred_fallthru
          _
        // Predicated region
        $region21: #{tpu_custom_call.1} parent=11 // pred_check
          %p590 = pneg %p120
        $region22: #{tpu_custom_call.1} parent=11 // pred_check_branch
          %592 = sbr.rel (%p590) target = $region24
        $region23: #{tpu_custom_call.1} parent=11 // pred_region
          _
        $region24: #{tpu_custom_call.1} parent=11 // pred_fallthru
          _
        // Predicated region
        $region25: #{tpu_custom_call.1} parent=11 // pred_check
          %p593 = pneg %p141
        $region26: #{tpu_custom_call.1} parent=11 // pred_check_branch
          %595 = sbr.rel (%p593) target = $region28
        $region27: #{tpu_custom_call.1} parent=11 // pred_region
          %597 = vsyncadd [#allocation10], 0
          %s599 = sshll.u32 %s3, 4
          %s600 = int_to_ptr.hbm [resolvable:$true] %s599
          %s601 = sshll.u32 [#allocation11], 4
          %s602 = int_to_ptr.vmem [resolvable:$true] %s601
          %604 = dma.hbm_to_vmem [thread:$0]  %s600, 16, %s602, [#allocation10]
        $region28: #{tpu_custom_call.1} parent=11 // pred_fallthru
          _
        // Predicated region
        $region29: #{tpu_custom_call.1} parent=11 // pred_check
          %p605 = pneg %p162
        $region30: #{tpu_custom_call.1} parent=11 // pred_check_branch
          %607 = sbr.rel (%p605) target = $region32
        $region31: #{tpu_custom_call.1} parent=11 // pred_region
          _
        $region32: #{tpu_custom_call.1} parent=11 // pred_fallthru
          _
        // Predicated region
        $region33: #{tpu_custom_call.1} parent=11 // pred_check
          %p608 = pneg %p183
        $region34: #{tpu_custom_call.1} parent=11 // pred_check_branch
          %610 = sbr.rel (%p608) target = $region36
        $region35: #{tpu_custom_call.1} parent=11 // pred_region
          _
        $region36: #{tpu_custom_call.1} parent=11 // pred_fallthru
          _
        // Predicated region
        $region37: #{tpu_custom_call.1} parent=11 // pred_check
          %p611 = pneg %p204
        $region38: #{tpu_custom_call.1} parent=11 // pred_check_branch
          %613 = sbr.rel (%p611) target = $region40
        $region39: #{tpu_custom_call.1} parent=11 // pred_region
          _
        $region40: #{tpu_custom_call.1} parent=11 // pred_fallthru
          _
        // Predicated region
        $region41: #{tpu_custom_call.1} parent=11 // pred_check
          %p614 = pneg %p225
        $region42: #{tpu_custom_call.1} parent=11 // pred_check_branch
          %616 = sbr.rel (%p614) target = $region44
        $region43: #{tpu_custom_call.1} parent=11 // pred_region
          _
        $region44: #{tpu_custom_call.1} parent=11 // pred_fallthru
          _
        // Predicated region
        $region45: #{tpu_custom_call.1} parent=11 // pred_check
          %p617 = pneg %p246
        $region46: #{tpu_custom_call.1} parent=11 // pred_check_branch
          %619 = sbr.rel (%p617) target = $region48
        $region47: #{tpu_custom_call.1} parent=11 // pred_region
          _
        $region48: #{tpu_custom_call.1} parent=11 // pred_fallthru
          _
        // Predicated region
        $region49: #{tpu_custom_call.1} parent=11 // pred_check
          %p620 = pneg %p267
        $region50: #{tpu_custom_call.1} parent=11 // pred_check_branch
          %622 = sbr.rel (%p620) target = $region52
        $region51: #{tpu_custom_call.1} parent=11 // pred_region
          _
        $region52: #{tpu_custom_call.1} parent=11 // pred_fallthru
          _
        // Predicated region
        $region53: #{tpu_custom_call.1} parent=11 // pred_check
          %p623 = pneg %p288
        $region54: #{tpu_custom_call.1} parent=11 // pred_check_branch
          %625 = sbr.rel (%p623) target = $region56
        $region55: #{tpu_custom_call.1} parent=11 // pred_region
          _
        $region56: #{tpu_custom_call.1} parent=11 // pred_fallthru
          _
        // Predicated region
        $region57: #{tpu_custom_call.1} parent=11 // pred_check
          %p626 = pneg %p309
        $region58: #{tpu_custom_call.1} parent=11 // pred_check_branch
          %628 = sbr.rel (%p626) target = $region60
        $region59: #{tpu_custom_call.1} parent=11 // pred_region
          _
        $region60: #{tpu_custom_call.1} parent=11 // pred_fallthru
          _
        // Predicated region
        $region61: #{tpu_custom_call.1} parent=11 // pred_check
          %p629 = pneg %p330
        $region62: #{tpu_custom_call.1} parent=11 // pred_check_branch
          %631 = sbr.rel (%p629) target = $region64
        $region63: #{tpu_custom_call.1} parent=11 // pred_region
          _
        $region64: #{tpu_custom_call.1} parent=11 // pred_fallthru
          _
        // Predicated region
        $region65: #{tpu_custom_call.1} parent=11 // pred_check
          %p632 = pneg %p351
        $region66: #{tpu_custom_call.1} parent=11 // pred_check_branch
          %634 = sbr.rel (%p632) target = $region68
        $region67: #{tpu_custom_call.1} parent=11 // pred_region
          _
        $region68: #{tpu_custom_call.1} parent=11 // pred_fallthru
          _
        // Predicated region
        $region69: #{tpu_custom_call.1} parent=11 // pred_check
          %p635 = pneg %p372
        $region70: #{tpu_custom_call.1} parent=11 // pred_check_branch
          %637 = sbr.rel (%p635) target = $region72
        $region71: #{tpu_custom_call.1} parent=11 // pred_region
          %639 = vsyncadd [#allocation13], 0
          %s640 = sshll.u32 %s14, 4
          %s641 = int_to_ptr.hbm [resolvable:$true] %s640
          %s642 = sshll.u32 [#allocation12], 4
          %s643 = int_to_ptr.vmem [resolvable:$true] %s642
          %648 = dma.hbm_to_vmem [thread:$0]  %s641, 512, %s643, [#allocation13], 128, 128, 8
        $region72: #{tpu_custom_call.1} parent=11 // pred_fallthru
          _
        // Predicated region
        $region73: #{tpu_custom_call.1} parent=11 // pred_check
          %p649 = pneg %p393
        $region74: #{tpu_custom_call.1} parent=11 // pred_check_branch
          %651 = sbr.rel (%p649) target = $region76
        $region75: #{tpu_custom_call.1} parent=11 // pred_region
          _
        $region76: #{tpu_custom_call.1} parent=11 // pred_fallthru
          _
        // Predicated region
        $region77: #{tpu_custom_call.1} parent=11 // pred_check
          %p652 = pneg %p414
        $region78: #{tpu_custom_call.1} parent=11 // pred_check_branch
          %654 = sbr.rel (%p652) target = $region80
        $region79: #{tpu_custom_call.1} parent=11 // pred_region
          %656 = vsyncadd [#allocation13], 0
          %s657 = sshll.u32 %s16, 4
          %s658 = int_to_ptr.hbm [resolvable:$true] %s657
          %s659 = sshll.u32 [#allocation14], 4
          %s660 = int_to_ptr.vmem [resolvable:$true] %s659
          %665 = dma.hbm_to_vmem [thread:$0]  %s658, 512, %s660, [#allocation13], 128, 128, 8
        $region80: #{tpu_custom_call.1} parent=11 // pred_fallthru
          _
        // Predicated region
        $region81: #{tpu_custom_call.1} parent=11 // pred_check
          %p666 = pneg %p435
        $region82: #{tpu_custom_call.1} parent=11 // pred_check_branch
          %668 = sbr.rel (%p666) target = $region84
        $region83: #{tpu_custom_call.1} parent=11 // pred_region
          _
        $region84: #{tpu_custom_call.1} parent=11 // pred_fallthru
          _
        // Predicated region
        $region85: #{tpu_custom_call.1} parent=11 // pred_check
          %p669 = pneg %p456
        $region86: #{tpu_custom_call.1} parent=11 // pred_check_branch
          %671 = sbr.rel (%p669) target = $region88
        $region87: #{tpu_custom_call.1} parent=11 // pred_region
          %673 = vsyncadd [#allocation16], 0
          %s674 = sshll.u32 %s18, 4
          %s675 = int_to_ptr.hbm [resolvable:$true] %s674
          %s676 = sshll.u32 [#allocation15], 4
          %s677 = int_to_ptr.vmem [resolvable:$true] %s676
          %682 = dma.hbm_to_vmem [thread:$0]  %s675, 512, %s677, [#allocation16], 128, 128, 8
        $region88: #{tpu_custom_call.1} parent=11 // pred_fallthru
          _
        // Predicated region
        $region89: #{tpu_custom_call.1} parent=11 // pred_check
          %p683 = pneg %p477
        $region90: #{tpu_custom_call.1} parent=11 // pred_check_branch
          %685 = sbr.rel (%p683) target = $region92
        $region91: #{tpu_custom_call.1} parent=11 // pred_region
          _
        $region92: #{tpu_custom_call.1} parent=11 // pred_fallthru
          _
        // Predicated region
        $region93: #{tpu_custom_call.1} parent=11 // pred_check
          %p686 = pneg %p498
        $region94: #{tpu_custom_call.1} parent=11 // pred_check_branch
          %688 = sbr.rel (%p686) target = $region96
        $region95: #{tpu_custom_call.1} parent=11 // pred_region
          _
        $region96: #{tpu_custom_call.1} parent=11 // pred_fallthru
          _
        // Predicated region
        $region97: #{tpu_custom_call.1} parent=11 // pred_check
          %p689 = pneg %p519
        $region98: #{tpu_custom_call.1} parent=11 // pred_check_branch
          %691 = sbr.rel (%p689) target = $region100
        $region99: #{tpu_custom_call.1} parent=11 // pred_region
          _
        $region100: #{tpu_custom_call.1} parent=11 // pred_fallthru
          _
      $region12: #{tpu_custom_call.1} parent=5 // pred_fallthru
        _
      %p692 = scmp.lt.s32.totalorder %s35, 2
      // Predicated region
      $region101: #{tpu_custom_call.1} parent=5 // pred_check
        %p693 = pneg %p692
      $region102: #{tpu_custom_call.1} parent=5 // pred_check_branch
        %695 = sbr.rel (%p693) target = $region104
      $region103: #{tpu_custom_call.1} parent=5 // pred_region
        _
      $region104: #{tpu_custom_call.1} parent=5 // pred_fallthru
        _
      %p696 = scmp.le.s32.totalorder 1, %s35
      %p697 = scmp.lt.s32.totalorder %s35, 3
      %p698 = pnand %p696, %p697
      %p699 = pneg %p698
      // Predicated region
      $region105: #{tpu_custom_call.1} parent=5 // pred_check
        _
      $region106: #{tpu_custom_call.1} parent=5 // pred_check_branch
        %701 = sbr.rel (%p698) target = $region108
      $region107: #{tpu_custom_call.1} parent=5 // pred_region
        %s702 = ssub.s32 %s35, 1
        // Predicated region
        $region109: #{tpu_custom_call.1} parent=107 // pred_check
          %p703 = pneg %p73
        $region110: #{tpu_custom_call.1} parent=107 // pred_check_branch
          %705 = sbr.rel (%p703) target = $region112
        $region111: #{tpu_custom_call.1} parent=107 // pred_region
          %707 = dma.done [#allocation7], 128
        $region112: #{tpu_custom_call.1} parent=107 // pred_fallthru
          _
        // Predicated region
        $region113: #{tpu_custom_call.1} parent=107 // pred_check
          %p708 = pneg %p99
        $region114: #{tpu_custom_call.1} parent=107 // pred_check_branch
          %710 = sbr.rel (%p708) target = $region116
        $region115: #{tpu_custom_call.1} parent=107 // pred_region
          %712 = dma.done [#allocation10], 128
        $region116: #{tpu_custom_call.1} parent=107 // pred_fallthru
          _
        // Predicated region
        $region117: #{tpu_custom_call.1} parent=107 // pred_check
          %p713 = pneg %p141
        $region118: #{tpu_custom_call.1} parent=107 // pred_check_branch
          %715 = sbr.rel (%p713) target = $region120
        $region119: #{tpu_custom_call.1} parent=107 // pred_region
          %717 = dma.done [#allocation10], 16
        $region120: #{tpu_custom_call.1} parent=107 // pred_fallthru
          _
        // Predicated region
        $region121: #{tpu_custom_call.1} parent=107 // pred_check
          %p718 = pneg %p372
        $region122: #{tpu_custom_call.1} parent=107 // pred_check_branch
          %720 = sbr.rel (%p718) target = $region124
        $region123: #{tpu_custom_call.1} parent=107 // pred_region
          %722 = dma.done [#allocation13], 512
        $region124: #{tpu_custom_call.1} parent=107 // pred_fallthru
          _
        // Predicated region
        $region125: #{tpu_custom_call.1} parent=107 // pred_check
          %p723 = pneg %p414
        $region126: #{tpu_custom_call.1} parent=107 // pred_check_branch
          %725 = sbr.rel (%p723) target = $region128
        $region127: #{tpu_custom_call.1} parent=107 // pred_region
          %727 = dma.done [#allocation13], 512
        $region128: #{tpu_custom_call.1} parent=107 // pred_fallthru
          _
        // Predicated region
        $region129: #{tpu_custom_call.1} parent=107 // pred_check
          %p728 = pneg %p456
        $region130: #{tpu_custom_call.1} parent=107 // pred_check_branch
          %730 = sbr.rel (%p728) target = $region132
        $region131: #{tpu_custom_call.1} parent=107 // pred_region
          %732 = dma.done [#allocation16], 512
        $region132: #{tpu_custom_call.1} parent=107 // pred_fallthru
          _
        %p733 = pneg %p73
        %p734 = pneg %p70
        %p735 = pneg %p99
        %p736 = pneg %p96
        %p737 = pneg %p120
        %p738 = pneg %p117
        %p739 = pneg %p141
        %p740 = pneg %p138
        %p741 = pneg %p162
        %p742 = pneg %p159
        %p743 = pneg %p183
        %p744 = pneg %p180
        %p745 = pneg %p204
        %p746 = pneg %p201
        %p747 = pneg %p225
        %p748 = pneg %p222
        %p749 = pneg %p246
        %p750 = pneg %p243
        %p751 = pneg %p267
        %p752 = pneg %p264
        %p753 = pneg %p288
        %p754 = pneg %p285
        %p755 = pneg %p309
        %p756 = pneg %p306
        %p757 = pneg %p330
        %p758 = pneg %p327
        %p759 = pneg %p351
        %p760 = pneg %p348
        %p761 = pneg %p372
        %p762 = pneg %p369
        %p763 = pneg %p393
        %p764 = pneg %p390
        %p765 = pneg %p414
        %p766 = pneg %p411
        %p767 = pneg %p435
        %p768 = pneg %p432
        %p769 = pneg %p456
        %p770 = pneg %p453
        %p771 = pneg %p477
        %p772 = pneg %p474
        %p773 = pneg %p498
        %p774 = pneg %p495
        %p775 = pneg %p519
        %p776 = pneg %p516
        %p777 = pneg %p547
        %p778 = pneg %p544
        %s779 = sand.u32 %s534, 1
        %s780 = scalar_lea.sflag [#allocation8], %s779
        %s781 = sand.u32 %s534, 1
        %s782 = smul.addr %s781, 8
        %s783 = scalar_lea.vmem [#allocation17], %s782
        %p784 = scmp.eq.s32.totalorder %s45, 0
        // Predicated region
        $region133: #{tpu_custom_call.1} parent=107 // pred_check
          %p785 = pneg %p784
        $region134: #{tpu_custom_call.1} parent=107 // pred_check_branch
          %787 = sbr.rel (%p785) target = $region136
        $region135: #{tpu_custom_call.1} parent=107 // pred_region
          %v788 = vld [vmem:[#allocation6] sm:$0xff]
          %v789 = vld [vmem:[%s2] sm:$0x1]
          %v790 = vld [vmem:[#allocation11] sm:$0x1]
          %vm791 = vcmask 261120
          %v792 = vsel %vm791, %v788, 0.0
          %793 = vadd.xlane.f32.xlu0 %v792
          %v794 = vpop.xlane.xlu0 %793
          %v795 = vrcp.pop 32.0
          %v796 = vmul.f32 32.0, %v795
          %v797 = vsub.f32 1.0, %v796
          %v798 = vmul.f32 %v795, %v797
          %v799 = vadd.f32 %v795, %v798
          %vm800 = vweird.f32 %v795
          %v801 = vsel %vm800, %v795, %v799
          %v802 = vmul.f32 %v794, %v801
          %v803 = vsub.f32 %v788, %v802
          %v804 = vmul.f32 %v803, %v803
          %v805 = vsel %vm791, %v804, 0.0
          %806 = vadd.xlane.f32.xlu0 %v805
          %v807 = vpop.xlane.xlu0 %806
          %v808 = vmul.f32 %v807, %v801
          %v809 = vadd.f32 %v808, 1e-05
          %v810 = vrsqrt.pop %v809
          %v811 = vmul.f32 %v810, %v809
          %v812 = vmul.f32 %v811, %v810
          %v813 = vmul.f32 0.5, %v812
          %v814 = vsub.f32 1.5, %v813
          %v815 = vmul.f32 %v810, %v814
          %vm816 = vweird.f32 %v809
          %vm817 = vweird.f32 %v810
          %vm818 = vmor %vm816, %vm817
          %v819 = vsel %vm818, %v810, %v815
          %v820 = vmul.f32 %v803, %v819
          %v822 = vperm.slane %v789, 0
          %v824 = vmul.f32 %v820, %v822
          %v826 = vperm.slane %v790, 0
          %v828 = vadd.f32 %v824, %v826
          %829 = vst.msk [vmem:[#allocation2] sm:$0xff] %vm791, %v828
          %v830 = vld [vmem:[%s9] sm:$0xff]
          %v831 = vld [vmem:[%s9 + $0x8] sm:$0xff]
          %v832 = vld [vmem:[%s9 + $0x10] sm:$0xff]
          %v833 = vld [vmem:[%s9 + $0x18] sm:$0xff]
          %v835 = vsel %vm791, %v828, 0
          %837 = vmatpush.msra.mxu0 0.0
          %838 = vmatpush.msra.mxu0 0.0
          %839 = vmatpush.msra.mxu0 0.0
          %840 = vmatpush.msra.mxu0 0.0
          %841 = vmatpush.msra.mxu0 0.0
          %842 = vmatpush.msra.mxu0 0.0
          %843 = vmatpush.msra.mxu0 0.0
          %844 = vmatpush.msra.mxu0 0.0
          %845 = vmatpush.msra.mxu0 0.0
          %846 = vmatpush.msra.mxu0 0.0
          %847 = vmatpush.msra.mxu0 0.0
          %848 = vmatpush.msra.mxu0 0.0
          %849 = vmatpush.msra.mxu0 %v833
          %850 = vmatpush.msra.mxu0 %v832
          %851 = vmatpush.msra.mxu0 %v831
          %852 = vmatpush.msra.mxu0 %v830
          %853 = vmatmul.f32.gmra.mxu0 %v835
          %v854 = vpop.f32.mrf.mxu0
          %v855 = vadd.f32 0.0, %v854
          %856 = vdwg.mxu0
          %vm857 = vcmask 523264
          %858 = vst.msk [vmem:[#allocation3] sm:$0xff] %vm857, %v855
          %v859 = vld [vmem:[#allocation9] sm:$0xff]
          %v860 = vld [vmem:[%s13] sm:$0xff]
          %v861 = vld [vmem:[%s13 + $0x8] sm:$0xff]
          %v862 = vld [vmem:[%s13 + $0x10] sm:$0xff]
          %v863 = vld [vmem:[%s13 + $0x18] sm:$0xff]
          %v865 = vsel %vm791, %v859, 0
          %867 = vmatpush.msra.mxu0 0.0
          %868 = vmatpush.msra.mxu0 0.0
          %869 = vmatpush.msra.mxu0 0.0
          %870 = vmatpush.msra.mxu0 0.0
          %871 = vmatpush.msra.mxu0 0.0
          %872 = vmatpush.msra.mxu0 0.0
          %873 = vmatpush.msra.mxu0 0.0
          %874 = vmatpush.msra.mxu0 0.0
          %875 = vmatpush.msra.mxu0 0.0
          %876 = vmatpush.msra.mxu0 0.0
          %877 = vmatpush.msra.mxu0 0.0
          %878 = vmatpush.msra.mxu0 0.0
          %879 = vmatpush.msra.mxu0 %v863
          %880 = vmatpush.msra.mxu0 %v862
          %881 = vmatpush.msra.mxu0 %v861
          %882 = vmatpush.msra.mxu0 %v860
          %883 = vmatmul.f32.gmra.mxu0 %v865
          %v884 = vpop.f32.mrf.mxu0
          %v885 = vadd.f32 0.0, %v884
          %886 = vdwg.mxu0
          %887 = vst.msk [vmem:[#allocation4] sm:$0xff] %vm857, %v885
        $region136: #{tpu_custom_call.1} parent=107 // pred_fallthru
          _
        %s888 = smul.u32 %s45, 8
        %s889 = scalar_lea.vmem [#allocation6], %s888
        %v890 = vld [vmem:[%s889] sm:$0xff]
        %s891 = scalar_lea.vmem [#allocation2], %s888
        %v892 = vld [vmem:[%s891] sm:$0xff]
        %v893 = vld [vmem:[%s8] sm:$0xff]
        %v894 = vld [vmem:[%s8 + $0x8] sm:$0xff]
        %v895 = vld [vmem:[%s8 + $0x10] sm:$0xff]
        %v896 = vld [vmem:[%s8 + $0x18] sm:$0xff]
        %vm897 = vcmask 261120
        %v899 = vsel %vm897, %v892, 0
        %901 = vmatpush.msra.mxu0 0.0
        %902 = vmatpush.msra.mxu0 0.0
        %903 = vmatpush.msra.mxu0 0.0
        %904 = vmatpush.msra.mxu0 0.0
        %905 = vmatpush.msra.mxu0 0.0
        %906 = vmatpush.msra.mxu0 0.0
        %907 = vmatpush.msra.mxu0 0.0
        %908 = vmatpush.msra.mxu0 0.0
        %909 = vmatpush.msra.mxu0 0.0
        %910 = vmatpush.msra.mxu0 0.0
        %911 = vmatpush.msra.mxu0 0.0
        %912 = vmatpush.msra.mxu0 0.0
        %913 = vmatpush.msra.mxu0 %v896
        %914 = vmatpush.msra.mxu0 %v895
        %915 = vmatpush.msra.mxu0 %v894
        %916 = vmatpush.msra.mxu0 %v893
        %917 = vmatmul.f32.gmra.mxu0 %v899
        %v918 = vpop.f32.mrf.mxu0
        %v919 = vadd.f32 0.0, %v918
        %920 = vdwg.mxu0
        %v921 = vld [vmem:[%s11] sm:$0x1]
        %v922 = vld [vmem:[#allocation3] sm:$0xff]
        %vm923 = vcmask 64512
        %v925 = vsel %vm923, %v919, 0
        %v928 = vsel %vm923, %v922, 0
        %930 = vmatpush.xpose.msra.mxu0 0.0
        %931 = vmatpush.xpose.msra.mxu0 0.0
        %932 = vmatpush.xpose.msra.mxu0 0.0
        %933 = vmatpush.xpose.msra.mxu0 0.0
        %934 = vmatpush.xpose.msra.mxu0 0.0
        %935 = vmatpush.xpose.msra.mxu0 0.0
        %936 = vmatpush.xpose.msra.mxu0 0.0
        %937 = vmatpush.xpose.msra.mxu0 0.0
        %938 = vmatpush.xpose.msra.mxu0 0.0
        %939 = vmatpush.xpose.msra.mxu0 0.0
        %940 = vmatpush.xpose.msra.mxu0 0.0
        %941 = vmatpush.xpose.msra.mxu0 0.0
        %942 = vmatpush.xpose.msra.mxu0 0.0
        %943 = vmatpush.xpose.msra.mxu0 0.0
        %944 = vmatpush.xpose.msra.mxu0 0.0
        %945 = vmatpush.xpose.msra.mxu0 %v928
        %946 = vmatmul.f32.gmra.mxu0 %v925
        %v947 = vpop.f32.mrf.mxu0
        %v948 = vadd.f32 0.0, %v947
        %949 = vdwg.mxu0
        %v950 = vsel %vm923, %v948, -inf
        %951 = vmax.xlane.f32.xlu0 %v950
        %v952 = vpop.xlane.xlu0 %951
        %v953 = vsub.f32 %v948, %v952
        %v954 = vmul.f32 %v953, 1.442695
        %v955 = vpow.pop %v954
        %v956 = vsel %vm923, %v955, 0.0
        %957 = vadd.xlane.f32.xlu0 %v956
        %v958 = vpop.xlane.xlu0 %957
        %v959 = vrcp.pop %v958
        %v960 = vmul.f32 %v958, %v959
        %v961 = vsub.f32 1.0, %v960
        %v962 = vmul.f32 %v959, %v961
        %v963 = vadd.f32 %v959, %v962
        %vm964 = vweird.f32 %v958
        %vm965 = vweird.f32 %v959
        %vm966 = vmor %vm964, %vm965
        %v967 = vsel %vm966, %v959, %v963
        %v968 = vand.u32 2147483647, %v958
        %vm969 = vcmp.eq.f32.partialorder %v968, 8.507059e+37
        %v970 = vand.u32 %v958, 2147483648
        %v971 = vor.u32 1.1754944e-38, %v970
        %v972 = vsel %vm969, %v971, %v967
        %v973 = vmul.f32 %v955, %v972
        %974 = vrot.lane.b32.xlu0 %v922, 96
        %v975 = vpop.permute.xlu0 %974
        %v978 = vsel %vm923, %v973, 0
        %980 = vmatpush.msra.mxu0 0.0
        %981 = vmatpush.msra.mxu0 0.0
        %982 = vmatpush.msra.mxu0 0.0
        %983 = vmatpush.msra.mxu0 0.0
        %984 = vmatpush.msra.mxu0 0.0
        %985 = vmatpush.msra.mxu0 0.0
        %986 = vmatpush.msra.mxu0 0.0
        %987 = vmatpush.msra.mxu0 0.0
        %988 = vmatpush.msra.mxu0 0.0
        %989 = vmatpush.msra.mxu0 0.0
        %990 = vmatpush.msra.mxu0 0.0
        %991 = vmatpush.msra.mxu0 0.0
        %992 = vmatpush.msra.mxu0 0.0
        %993 = vmatpush.msra.mxu0 0.0
        %994 = vmatpush.msra.mxu0 0.0
        %995 = vmatpush.msra.mxu0 %v975
        %996 = vmatmul.f32.gmra.mxu0 %v978
        %v997 = vpop.f32.mrf.mxu0
        %v998 = vadd.f32 0.0, %v997
        %999 = vdwg.mxu0
        %1000 = vst.msk [vmem:[#allocation5] sm:$0xff] %vm923, %v998
        %v1001 = vld [vmem:[#allocation3] sm:$0xff]
        %1002 = vrot.lane.b32.xlu0 %v919, 120
        %v1003 = vpop.permute.xlu0 %1002
        %1005 = vrot.lane.b32.xlu0 %v1001, 120
        %v1006 = vpop.permute.xlu0 %1005
        %v1007 = vsel %vm923, %v1003, 0
        %v1009 = vsel %vm923, %v1006, 0
        %1011 = vmatpush.xpose.msra.mxu0 0.0
        %1012 = vmatpush.xpose.msra.mxu0 0.0
        %1013 = vmatpush.xpose.msra.mxu0 0.0
        %1014 = vmatpush.xpose.msra.mxu0 0.0
        %1015 = vmatpush.xpose.msra.mxu0 0.0
        %1016 = vmatpush.xpose.msra.mxu0 0.0
        %1017 = vmatpush.xpose.msra.mxu0 0.0
        %1018 = vmatpush.xpose.msra.mxu0 0.0
        %1019 = vmatpush.xpose.msra.mxu0 0.0
        %1020 = vmatpush.xpose.msra.mxu0 0.0
        %1021 = vmatpush.xpose.msra.mxu0 0.0
        %1022 = vmatpush.xpose.msra.mxu0 0.0
        %1023 = vmatpush.xpose.msra.mxu0 0.0
        %1024 = vmatpush.xpose.msra.mxu0 0.0
        %1025 = vmatpush.xpose.msra.mxu0 0.0
        %1026 = vmatpush.xpose.msra.mxu0 %v1009
        %1027 = vmatmul.f32.gmra.mxu0 %v1007
        %v1028 = vpop.f32.mrf.mxu0
        %v1029 = vadd.f32 0.0, %v1028
        %1030 = vdwg.mxu0
        %v1031 = vsel %vm923, %v1029, -inf
        %1032 = vmax.xlane.f32.xlu0 %v1031
        %v1033 = vpop.xlane.xlu0 %1032
        %v1034 = vsub.f32 %v1029, %v1033
        %v1035 = vmul.f32 %v1034, 1.442695
        %v1036 = vpow.pop %v1035
        %v1037 = vsel %vm923, %v1036, 0.0
        %1038 = vadd.xlane.f32.xlu0 %v1037
        %v1039 = vpop.xlane.xlu0 %1038
        %v1040 = vrcp.pop %v1039
        %v1041 = vmul.f32 %v1039, %v1040
        %v1042 = vsub.f32 1.0, %v1041
        %v1043 = vmul.f32 %v1040, %v1042
        %v1044 = vadd.f32 %v1040, %v1043
        %vm1045 = vweird.f32 %v1039
        %vm1046 = vweird.f32 %v1040
        %vm1047 = vmor %vm1045, %vm1046
        %v1048 = vsel %vm1047, %v1040, %v1044
        %v1049 = vand.u32 2147483647, %v1039
        %vm1050 = vcmp.eq.f32.partialorder %v1049, 8.507059e+37
        %v1051 = vand.u32 %v1039, 2147483648
        %v1052 = vor.u32 1.1754944e-38, %v1051
        %v1053 = vsel %vm1050, %v1052, %v1048
        %v1054 = vmul.f32 %v1036, %v1053
        %1055 = vrot.lane.b32.xlu0 %v1001, 88
        %v1056 = vpop.permute.xlu0 %1055
        %v1059 = vsel %vm923, %v1054, 0
        %1061 = vmatpush.msra.mxu0 0.0
        %1062 = vmatpush.msra.mxu0 0.0
        %1063 = vmatpush.msra.mxu0 0.0
        %1064 = vmatpush.msra.mxu0 0.0
        %1065 = vmatpush.msra.mxu0 0.0
        %1066 = vmatpush.msra.mxu0 0.0
        %1067 = vmatpush.msra.mxu0 0.0
        %1068 = vmatpush.msra.mxu0 0.0
        %1069 = vmatpush.msra.mxu0 0.0
        %1070 = vmatpush.msra.mxu0 0.0
        %1071 = vmatpush.msra.mxu0 0.0
        %1072 = vmatpush.msra.mxu0 0.0
        %1073 = vmatpush.msra.mxu0 0.0
        %1074 = vmatpush.msra.mxu0 0.0
        %1075 = vmatpush.msra.mxu0 0.0
        %1076 = vmatpush.msra.mxu0 %v1056
        %1077 = vmatmul.f32.gmra.mxu0 %v1059
        %v1078 = vpop.f32.mrf.mxu0
        %v1079 = vadd.f32 0.0, %v1078
        %1080 = vdwg.mxu0
        %1082 = vrot.lane.b32.xlu0 %v1079, 8
        %v1083 = vpop.permute.xlu0 %1082
        %vm1085 = vcmask 130112
        %1086 = vst.msk [vmem:[#allocation5] sm:$0xff] %vm1085, %v1083
        %v1087 = vld [vmem:[#allocation3] sm:$0xff]
        %1088 = vrot.lane.b32.xlu0 %v919, 112
        %v1089 = vpop.permute.xlu0 %1088
        %1091 = vrot.lane.b32.xlu0 %v1087, 112
        %v1092 = vpop.permute.xlu0 %1091
        %v1093 = vsel %vm923, %v1089, 0
        %v1095 = vsel %vm923, %v1092, 0
        %1097 = vmatpush.xpose.msra.mxu0 0.0
        %1098 = vmatpush.xpose.msra.mxu0 0.0
        %1099 = vmatpush.xpose.msra.mxu0 0.0
        %1100 = vmatpush.xpose.msra.mxu0 0.0
        %1101 = vmatpush.xpose.msra.mxu0 0.0
        %1102 = vmatpush.xpose.msra.mxu0 0.0
        %1103 = vmatpush.xpose.msra.mxu0 0.0
        %1104 = vmatpush.xpose.msra.mxu0 0.0
        %1105 = vmatpush.xpose.msra.mxu0 0.0
        %1106 = vmatpush.xpose.msra.mxu0 0.0
        %1107 = vmatpush.xpose.msra.mxu0 0.0
        %1108 = vmatpush.xpose.msra.mxu0 0.0
        %1109 = vmatpush.xpose.msra.mxu0 0.0
        %1110 = vmatpush.xpose.msra.mxu0 0.0
        %1111 = vmatpush.xpose.msra.mxu0 0.0
        %1112 = vmatpush.xpose.msra.mxu0 %v1095
        %1113 = vmatmul.f32.gmra.mxu0 %v1093
        %v1114 = vpop.f32.mrf.mxu0
        %v1115 = vadd.f32 0.0, %v1114
        %1116 = vdwg.mxu0
        %v1117 = vsel %vm923, %v1115, -inf
        %1118 = vmax.xlane.f32.xlu0 %v1117
        %v1119 = vpop.xlane.xlu0 %1118
        %v1120 = vsub.f32 %v1115, %v1119
        %v1121 = vmul.f32 %v1120, 1.442695
        %v1122 = vpow.pop %v1121
        %v1123 = vsel %vm923, %v1122, 0.0
        %1124 = vadd.xlane.f32.xlu0 %v1123
        %v1125 = vpop.xlane.xlu0 %1124
        %v1126 = vrcp.pop %v1125
        %v1127 = vmul.f32 %v1125, %v1126
        %v1128 = vsub.f32 1.0, %v1127
        %v1129 = vmul.f32 %v1126, %v1128
        %v1130 = vadd.f32 %v1126, %v1129
        %vm1131 = vweird.f32 %v1125
        %vm1132 = vweird.f32 %v1126
        %vm1133 = vmor %vm1131, %vm1132
        %v1134 = vsel %vm1133, %v1126, %v1130
        %v1135 = vand.u32 2147483647, %v1125
        %vm1136 = vcmp.eq.f32.partialorder %v1135, 8.507059e+37
        %v1137 = vand.u32 %v1125, 2147483648
        %v1138 = vor.u32 1.1754944e-38, %v1137
        %v1139 = vsel %vm1136, %v1138, %v1134
        %v1140 = vmul.f32 %v1122, %v1139
        %1141 = vrot.lane.b32.xlu0 %v1087, 80
        %v1142 = vpop.permute.xlu0 %1141
        %v1145 = vsel %vm923, %v1140, 0
        %1147 = vmatpush.msra.mxu0 0.0
        %1148 = vmatpush.msra.mxu0 0.0
        %1149 = vmatpush.msra.mxu0 0.0
        %1150 = vmatpush.msra.mxu0 0.0
        %1151 = vmatpush.msra.mxu0 0.0
        %1152 = vmatpush.msra.mxu0 0.0
        %1153 = vmatpush.msra.mxu0 0.0
        %1154 = vmatpush.msra.mxu0 0.0
        %1155 = vmatpush.msra.mxu0 0.0
        %1156 = vmatpush.msra.mxu0 0.0
        %1157 = vmatpush.msra.mxu0 0.0
        %1158 = vmatpush.msra.mxu0 0.0
        %1159 = vmatpush.msra.mxu0 0.0
        %1160 = vmatpush.msra.mxu0 0.0
        %1161 = vmatpush.msra.mxu0 0.0
        %1162 = vmatpush.msra.mxu0 %v1142
        %1163 = vmatmul.f32.gmra.mxu0 %v1145
        %v1164 = vpop.f32.mrf.mxu0
        %v1165 = vadd.f32 0.0, %v1164
        %1166 = vdwg.mxu0
        %1168 = vrot.lane.b32.xlu0 %v1165, 16
        %v1169 = vpop.permute.xlu0 %1168
        %vm1171 = vcmask 195712
        %1172 = vst.msk [vmem:[#allocation5] sm:$0xff] %vm1171, %v1169
        %v1173 = vld [vmem:[#allocation3] sm:$0xff]
        %1174 = vrot.lane.b32.xlu0 %v919, 104
        %v1175 = vpop.permute.xlu0 %1174
        %1177 = vrot.lane.b32.xlu0 %v1173, 104
        %v1178 = vpop.permute.xlu0 %1177
        %v1179 = vsel %vm923, %v1175, 0
        %v1181 = vsel %vm923, %v1178, 0
        %1183 = vmatpush.xpose.msra.mxu0 0.0
        %1184 = vmatpush.xpose.msra.mxu0 0.0
        %1185 = vmatpush.xpose.msra.mxu0 0.0
        %1186 = vmatpush.xpose.msra.mxu0 0.0
        %1187 = vmatpush.xpose.msra.mxu0 0.0
        %1188 = vmatpush.xpose.msra.mxu0 0.0
        %1189 = vmatpush.xpose.msra.mxu0 0.0
        %1190 = vmatpush.xpose.msra.mxu0 0.0
        %1191 = vmatpush.xpose.msra.mxu0 0.0
        %1192 = vmatpush.xpose.msra.mxu0 0.0
        %1193 = vmatpush.xpose.msra.mxu0 0.0
        %1194 = vmatpush.xpose.msra.mxu0 0.0
        %1195 = vmatpush.xpose.msra.mxu0 0.0
        %1196 = vmatpush.xpose.msra.mxu0 0.0
        %1197 = vmatpush.xpose.msra.mxu0 0.0
        %1198 = vmatpush.xpose.msra.mxu0 %v1181
        %1199 = vmatmul.f32.gmra.mxu0 %v1179
        %v1200 = vpop.f32.mrf.mxu0
        %v1201 = vadd.f32 0.0, %v1200
        %1202 = vdwg.mxu0
        %v1203 = vsel %vm923, %v1201, -inf
        %1204 = vmax.xlane.f32.xlu0 %v1203
        %v1205 = vpop.xlane.xlu0 %1204
        %v1206 = vsub.f32 %v1201, %v1205
        %v1207 = vmul.f32 %v1206, 1.442695
        %v1208 = vpow.pop %v1207
        %v1209 = vsel %vm923, %v1208, 0.0
        %1210 = vadd.xlane.f32.xlu0 %v1209
        %v1211 = vpop.xlane.xlu0 %1210
        %v1212 = vrcp.pop %v1211
        %v1213 = vmul.f32 %v1211, %v1212
        %v1214 = vsub.f32 1.0, %v1213
        %v1215 = vmul.f32 %v1212, %v1214
        %v1216 = vadd.f32 %v1212, %v1215
        %vm1217 = vweird.f32 %v1211
        %vm1218 = vweird.f32 %v1212
        %vm1219 = vmor %vm1217, %vm1218
        %v1220 = vsel %vm1219, %v1212, %v1216
        %v1221 = vand.u32 2147483647, %v1211
        %vm1222 = vcmp.eq.f32.partialorder %v1221, 8.507059e+37
        %v1223 = vand.u32 %v1211, 2147483648
        %v1224 = vor.u32 1.1754944e-38, %v1223
        %v1225 = vsel %vm1222, %v1224, %v1220
        %v1226 = vmul.f32 %v1208, %v1225
        %1227 = vrot.lane.b32.xlu0 %v1173, 72
        %v1228 = vpop.permute.xlu0 %1227
        %v1231 = vsel %vm923, %v1226, 0
        %1233 = vmatpush.msra.mxu0 0.0
        %1234 = vmatpush.msra.mxu0 0.0
        %1235 = vmatpush.msra.mxu0 0.0
        %1236 = vmatpush.msra.mxu0 0.0
        %1237 = vmatpush.msra.mxu0 0.0
        %1238 = vmatpush.msra.mxu0 0.0
        %1239 = vmatpush.msra.mxu0 0.0
        %1240 = vmatpush.msra.mxu0 0.0
        %1241 = vmatpush.msra.mxu0 0.0
        %1242 = vmatpush.msra.mxu0 0.0
        %1243 = vmatpush.msra.mxu0 0.0
        %1244 = vmatpush.msra.mxu0 0.0
        %1245 = vmatpush.msra.mxu0 0.0
        %1246 = vmatpush.msra.mxu0 0.0
        %1247 = vmatpush.msra.mxu0 0.0
        %1248 = vmatpush.msra.mxu0 %v1228
        %1249 = vmatmul.f32.gmra.mxu0 %v1231
        %v1250 = vpop.f32.mrf.mxu0
        %v1251 = vadd.f32 0.0, %v1250
        %1252 = vdwg.mxu0
        %1254 = vrot.lane.b32.xlu0 %v1251, 24
        %v1255 = vpop.permute.xlu0 %1254
        %vm1257 = vcmask 261312
        %1258 = vst.msk [vmem:[#allocation5] sm:$0xff] %vm1257, %v1255
        %v1259 = vld [vmem:[#allocation5] sm:$0xff]
        %v1260 = vld [vmem:[%s10] sm:$0xff]
        %v1261 = vld [vmem:[%s10 + $0x8] sm:$0xff]
        %v1262 = vld [vmem:[%s10 + $0x10] sm:$0xff]
        %v1263 = vld [vmem:[%s10 + $0x18] sm:$0xff]
        %v1265 = vperm.slane %v921, 0
        %v1268 = vsel %vm897, %v1259, 0
        %1270 = vmatpush.msra.mxu0 0.0
        %1271 = vmatpush.msra.mxu0 0.0
        %1272 = vmatpush.msra.mxu0 0.0
        %1273 = vmatpush.msra.mxu0 0.0
        %1274 = vmatpush.msra.mxu0 0.0
        %1275 = vmatpush.msra.mxu0 0.0
        %1276 = vmatpush.msra.mxu0 0.0
        %1277 = vmatpush.msra.mxu0 0.0
        %1278 = vmatpush.msra.mxu0 0.0
        %1279 = vmatpush.msra.mxu0 0.0
        %1280 = vmatpush.msra.mxu0 0.0
        %1281 = vmatpush.msra.mxu0 0.0
        %1282 = vmatpush.msra.mxu0 %v1263
        %1283 = vmatpush.msra.mxu0 %v1262
        %1284 = vmatpush.msra.mxu0 %v1261
        %1285 = vmatpush.msra.mxu0 %v1260
        %1286 = vmatmul.f32.gmra.mxu0 %v1268
        %v1287 = vpop.f32.mrf.mxu0
        %v1288 = vadd.f32 %v1265, %v1287
        %1289 = vdwg.mxu0
        %v1290 = vadd.f32 %v890, %v1288
        %v1291 = vld [vmem:[%s4] sm:$0x1]
        %v1292 = vld [vmem:[%s5] sm:$0x1]
        %v1293 = vsel %vm897, %v1290, 0.0
        %1294 = vadd.xlane.f32.xlu0 %v1293
        %v1295 = vpop.xlane.xlu0 %1294
        %v1296 = vrcp.pop 32.0
        %v1297 = vmul.f32 32.0, %v1296
        %v1298 = vsub.f32 1.0, %v1297
        %v1299 = vmul.f32 %v1296, %v1298
        %v1300 = vadd.f32 %v1296, %v1299
        %vm1301 = vweird.f32 %v1296
        %v1302 = vsel %vm1301, %v1296, %v1300
        %v1303 = vmul.f32 %v1295, %v1302
        %v1304 = vsub.f32 %v1290, %v1303
        %v1305 = vmul.f32 %v1304, %v1304
        %v1306 = vsel %vm897, %v1305, 0.0
        %1307 = vadd.xlane.f32.xlu0 %v1306
        %v1308 = vpop.xlane.xlu0 %1307
        %v1309 = vmul.f32 %v1308, %v1302
        %v1310 = vadd.f32 %v1309, 1e-05
        %v1311 = vrsqrt.pop %v1310
        %v1312 = vmul.f32 %v1311, %v1310
        %v1313 = vmul.f32 %v1312, %v1311
        %v1314 = vmul.f32 0.5, %v1313
        %v1315 = vsub.f32 1.5, %v1314
        %v1316 = vmul.f32 %v1311, %v1315
        %vm1317 = vweird.f32 %v1310
        %vm1318 = vweird.f32 %v1311
        %vm1319 = vmor %vm1317, %vm1318
        %v1320 = vsel %vm1319, %v1311, %v1316
        %v1321 = vmul.f32 %v1304, %v1320
        %v1323 = vperm.slane %v1291, 0
        %v1325 = vmul.f32 %v1321, %v1323
        %v1327 = vperm.slane %v1292, 0
        %v1329 = vadd.f32 %v1325, %v1327
        %v1330 = vld [vmem:[%s12] sm:$0xff]
        %v1331 = vld [vmem:[%s12 + $0x8] sm:$0xff]
        %v1332 = vld [vmem:[%s12 + $0x10] sm:$0xff]
        %v1333 = vld [vmem:[%s12 + $0x18] sm:$0xff]
        %v1335 = vsel %vm897, %v1329, 0
        %1337 = vmatpush.msra.mxu0 0.0
        %1338 = vmatpush.msra.mxu0 0.0
        %1339 = vmatpush.msra.mxu0 0.0
        %1340 = vmatpush.msra.mxu0 0.0
        %1341 = vmatpush.msra.mxu0 0.0
        %1342 = vmatpush.msra.mxu0 0.0
        %1343 = vmatpush.msra.mxu0 0.0
        %1344 = vmatpush.msra.mxu0 0.0
        %1345 = vmatpush.msra.mxu0 0.0
        %1346 = vmatpush.msra.mxu0 0.0
        %1347 = vmatpush.msra.mxu0 0.0
        %1348 = vmatpush.msra.mxu0 0.0
        %1349 = vmatpush.msra.mxu0 %v1333
        %1350 = vmatpush.msra.mxu0 %v1332
        %1351 = vmatpush.msra.mxu0 %v1331
        %1352 = vmatpush.msra.mxu0 %v1330
        %1353 = vmatmul.f32.gmra.mxu0 %v1335
        %v1354 = vpop.f32.mrf.mxu0
        %v1355 = vadd.f32 0.0, %v1354
        %1356 = vdwg.mxu0
        %v1357 = vld [vmem:[%s15] sm:$0x1]
        %v1358 = vld [vmem:[#allocation4] sm:$0xff]
        %v1360 = vsel %vm923, %v1355, 0
        %v1363 = vsel %vm923, %v1358, 0
        %1365 = vmatpush.xpose.msra.mxu0 0.0
        %1366 = vmatpush.xpose.msra.mxu0 0.0
        %1367 = vmatpush.xpose.msra.mxu0 0.0
        %1368 = vmatpush.xpose.msra.mxu0 0.0
        %1369 = vmatpush.xpose.msra.mxu0 0.0
        %1370 = vmatpush.xpose.msra.mxu0 0.0
        %1371 = vmatpush.xpose.msra.mxu0 0.0
        %1372 = vmatpush.xpose.msra.mxu0 0.0
        %1373 = vmatpush.xpose.msra.mxu0 0.0
        %1374 = vmatpush.xpose.msra.mxu0 0.0
        %1375 = vmatpush.xpose.msra.mxu0 0.0
        %1376 = vmatpush.xpose.msra.mxu0 0.0
        %1377 = vmatpush.xpose.msra.mxu0 0.0
        %1378 = vmatpush.xpose.msra.mxu0 0.0
        %1379 = vmatpush.xpose.msra.mxu0 0.0
        %1380 = vmatpush.xpose.msra.mxu0 %v1363
        %1381 = vmatmul.f32.gmra.mxu0 %v1360
        %v1382 = vpop.f32.mrf.mxu0
        %v1383 = vadd.f32 0.0, %v1382
        %1384 = vdwg.mxu0
        %v1385 = vsel %vm923, %v1383, -inf
        %1386 = vmax.xlane.f32.xlu0 %v1385
        %v1387 = vpop.xlane.xlu0 %1386
        %v1388 = vsub.f32 %v1383, %v1387
        %v1389 = vmul.f32 %v1388, 1.442695
        %v1390 = vpow.pop %v1389
        %v1391 = vsel %vm923, %v1390, 0.0
        %1392 = vadd.xlane.f32.xlu0 %v1391
        %v1393 = vpop.xlane.xlu0 %1392
        %v1394 = vrcp.pop %v1393
        %v1395 = vmul.f32 %v1393, %v1394
        %v1396 = vsub.f32 1.0, %v1395
        %v1397 = vmul.f32 %v1394, %v1396
        %v1398 = vadd.f32 %v1394, %v1397
        %vm1399 = vweird.f32 %v1393
        %vm1400 = vweird.f32 %v1394
        %vm1401 = vmor %vm1399, %vm1400
        %v1402 = vsel %vm1401, %v1394, %v1398
        %v1403 = vand.u32 2147483647, %v1393
        %vm1404 = vcmp.eq.f32.partialorder %v1403, 8.507059e+37
        %v1405 = vand.u32 %v1393, 2147483648
        %v1406 = vor.u32 1.1754944e-38, %v1405
        %v1407 = vsel %vm1404, %v1406, %v1402
        %v1408 = vmul.f32 %v1390, %v1407
        %1409 = vrot.lane.b32.xlu0 %v1358, 96
        %v1410 = vpop.permute.xlu0 %1409
        %v1413 = vsel %vm923, %v1408, 0
        %1415 = vmatpush.msra.mxu0 0.0
        %1416 = vmatpush.msra.mxu0 0.0
        %1417 = vmatpush.msra.mxu0 0.0
        %1418 = vmatpush.msra.mxu0 0.0
        %1419 = vmatpush.msra.mxu0 0.0
        %1420 = vmatpush.msra.mxu0 0.0
        %1421 = vmatpush.msra.mxu0 0.0
        %1422 = vmatpush.msra.mxu0 0.0
        %1423 = vmatpush.msra.mxu0 0.0
        %1424 = vmatpush.msra.mxu0 0.0
        %1425 = vmatpush.msra.mxu0 0.0
        %1426 = vmatpush.msra.mxu0 0.0
        %1427 = vmatpush.msra.mxu0 0.0
        %1428 = vmatpush.msra.mxu0 0.0
        %1429 = vmatpush.msra.mxu0 0.0
        %1430 = vmatpush.msra.mxu0 %v1410
        %1431 = vmatmul.f32.gmra.mxu0 %v1413
        %v1432 = vpop.f32.mrf.mxu0
        %v1433 = vadd.f32 0.0, %v1432
        %1434 = vdwg.mxu0
        %1435 = vst.msk [vmem:[#allocation5] sm:$0xff] %vm923, %v1433
        %v1436 = vld [vmem:[#allocation4] sm:$0xff]
        %1437 = vrot.lane.b32.xlu0 %v1355, 120
        %v1438 = vpop.permute.xlu0 %1437
        %1440 = vrot.lane.b32.xlu0 %v1436, 120
        %v1441 = vpop.permute.xlu0 %1440
        %v1442 = vsel %vm923, %v1438, 0
        %v1444 = vsel %vm923, %v1441, 0
        %1446 = vmatpush.xpose.msra.mxu0 0.0
        %1447 = vmatpush.xpose.msra.mxu0 0.0
        %1448 = vmatpush.xpose.msra.mxu0 0.0
        %1449 = vmatpush.xpose.msra.mxu0 0.0
        %1450 = vmatpush.xpose.msra.mxu0 0.0
        %1451 = vmatpush.xpose.msra.mxu0 0.0
        %1452 = vmatpush.xpose.msra.mxu0 0.0
        %1453 = vmatpush.xpose.msra.mxu0 0.0
        %1454 = vmatpush.xpose.msra.mxu0 0.0
        %1455 = vmatpush.xpose.msra.mxu0 0.0
        %1456 = vmatpush.xpose.msra.mxu0 0.0
        %1457 = vmatpush.xpose.msra.mxu0 0.0
        %1458 = vmatpush.xpose.msra.mxu0 0.0
        %1459 = vmatpush.xpose.msra.mxu0 0.0
        %1460 = vmatpush.xpose.msra.mxu0 0.0
        %1461 = vmatpush.xpose.msra.mxu0 %v1444
        %1462 = vmatmul.f32.gmra.mxu0 %v1442
        %v1463 = vpop.f32.mrf.mxu0
        %v1464 = vadd.f32 0.0, %v1463
        %1465 = vdwg.mxu0
        %v1466 = vsel %vm923, %v1464, -inf
        %1467 = vmax.xlane.f32.xlu0 %v1466
        %v1468 = vpop.xlane.xlu0 %1467
        %v1469 = vsub.f32 %v1464, %v1468
        %v1470 = vmul.f32 %v1469, 1.442695
        %v1471 = vpow.pop %v1470
        %v1472 = vsel %vm923, %v1471, 0.0
        %1473 = vadd.xlane.f32.xlu0 %v1472
        %v1474 = vpop.xlane.xlu0 %1473
        %v1475 = vrcp.pop %v1474
        %v1476 = vmul.f32 %v1474, %v1475
        %v1477 = vsub.f32 1.0, %v1476
        %v1478 = vmul.f32 %v1475, %v1477
        %v1479 = vadd.f32 %v1475, %v1478
        %vm1480 = vweird.f32 %v1474
        %vm1481 = vweird.f32 %v1475
        %vm1482 = vmor %vm1480, %vm1481
        %v1483 = vsel %vm1482, %v1475, %v1479
        %v1484 = vand.u32 2147483647, %v1474
        %vm1485 = vcmp.eq.f32.partialorder %v1484, 8.507059e+37
        %v1486 = vand.u32 %v1474, 2147483648
        %v1487 = vor.u32 1.1754944e-38, %v1486
        %v1488 = vsel %vm1485, %v1487, %v1483
        %v1489 = vmul.f32 %v1471, %v1488
        %1490 = vrot.lane.b32.xlu0 %v1436, 88
        %v1491 = vpop.permute.xlu0 %1490
        %v1494 = vsel %vm923, %v1489, 0
        %1496 = vmatpush.msra.mxu0 0.0
        %1497 = vmatpush.msra.mxu0 0.0
        %1498 = vmatpush.msra.mxu0 0.0
        %1499 = vmatpush.msra.mxu0 0.0
        %1500 = vmatpush.msra.mxu0 0.0
        %1501 = vmatpush.msra.mxu0 0.0
        %1502 = vmatpush.msra.mxu0 0.0
        %1503 = vmatpush.msra.mxu0 0.0
        %1504 = vmatpush.msra.mxu0 0.0
        %1505 = vmatpush.msra.mxu0 0.0
        %1506 = vmatpush.msra.mxu0 0.0
        %1507 = vmatpush.msra.mxu0 0.0
        %1508 = vmatpush.msra.mxu0 0.0
        %1509 = vmatpush.msra.mxu0 0.0
        %1510 = vmatpush.msra.mxu0 0.0
        %1511 = vmatpush.msra.mxu0 %v1491
        %1512 = vmatmul.f32.gmra.mxu0 %v1494
        %v1513 = vpop.f32.mrf.mxu0
        %v1514 = vadd.f32 0.0, %v1513
        %1515 = vdwg.mxu0
        %1517 = vrot.lane.b32.xlu0 %v1514, 8
        %v1518 = vpop.permute.xlu0 %1517
        %1520 = vst.msk [vmem:[#allocation5] sm:$0xff] %vm1085, %v1518
        %v1521 = vld [vmem:[#allocation4] sm:$0xff]
        %1522 = vrot.lane.b32.xlu0 %v1355, 112
        %v1523 = vpop.permute.xlu0 %1522
        %1525 = vrot.lane.b32.xlu0 %v1521, 112
        %v1526 = vpop.permute.xlu0 %1525
        %v1527 = vsel %vm923, %v1523, 0
        %v1529 = vsel %vm923, %v1526, 0
        %1531 = vmatpush.xpose.msra.mxu0 0.0
        %1532 = vmatpush.xpose.msra.mxu0 0.0
        %1533 = vmatpush.xpose.msra.mxu0 0.0
        %1534 = vmatpush.xpose.msra.mxu0 0.0
        %1535 = vmatpush.xpose.msra.mxu0 0.0
        %1536 = vmatpush.xpose.msra.mxu0 0.0
        %1537 = vmatpush.xpose.msra.mxu0 0.0
        %1538 = vmatpush.xpose.msra.mxu0 0.0
        %1539 = vmatpush.xpose.msra.mxu0 0.0
        %1540 = vmatpush.xpose.msra.mxu0 0.0
        %1541 = vmatpush.xpose.msra.mxu0 0.0
        %1542 = vmatpush.xpose.msra.mxu0 0.0
        %1543 = vmatpush.xpose.msra.mxu0 0.0
        %1544 = vmatpush.xpose.msra.mxu0 0.0
        %1545 = vmatpush.xpose.msra.mxu0 0.0
        %1546 = vmatpush.xpose.msra.mxu0 %v1529
        %1547 = vmatmul.f32.gmra.mxu0 %v1527
        %v1548 = vpop.f32.mrf.mxu0
        %v1549 = vadd.f32 0.0, %v1548
        %1550 = vdwg.mxu0
        %v1551 = vsel %vm923, %v1549, -inf
        %1552 = vmax.xlane.f32.xlu0 %v1551
        %v1553 = vpop.xlane.xlu0 %1552
        %v1554 = vsub.f32 %v1549, %v1553
        %v1555 = vmul.f32 %v1554, 1.442695
        %v1556 = vpow.pop %v1555
        %v1557 = vsel %vm923, %v1556, 0.0
        %1558 = vadd.xlane.f32.xlu0 %v1557
        %v1559 = vpop.xlane.xlu0 %1558
        %v1560 = vrcp.pop %v1559
        %v1561 = vmul.f32 %v1559, %v1560
        %v1562 = vsub.f32 1.0, %v1561
        %v1563 = vmul.f32 %v1560, %v1562
        %v1564 = vadd.f32 %v1560, %v1563
        %vm1565 = vweird.f32 %v1559
        %vm1566 = vweird.f32 %v1560
        %vm1567 = vmor %vm1565, %vm1566
        %v1568 = vsel %vm1567, %v1560, %v1564
        %v1569 = vand.u32 2147483647, %v1559
        %vm1570 = vcmp.eq.f32.partialorder %v1569, 8.507059e+37
        %v1571 = vand.u32 %v1559, 2147483648
        %v1572 = vor.u32 1.1754944e-38, %v1571
        %v1573 = vsel %vm1570, %v1572, %v1568
        %v1574 = vmul.f32 %v1556, %v1573
        %1575 = vrot.lane.b32.xlu0 %v1521, 80
        %v1576 = vpop.permute.xlu0 %1575
        %v1579 = vsel %vm923, %v1574, 0
        %1581 = vmatpush.msra.mxu0 0.0
        %1582 = vmatpush.msra.mxu0 0.0
        %1583 = vmatpush.msra.mxu0 0.0
        %1584 = vmatpush.msra.mxu0 0.0
        %1585 = vmatpush.msra.mxu0 0.0
        %1586 = vmatpush.msra.mxu0 0.0
        %1587 = vmatpush.msra.mxu0 0.0
        %1588 = vmatpush.msra.mxu0 0.0
        %1589 = vmatpush.msra.mxu0 0.0
        %1590 = vmatpush.msra.mxu0 0.0
        %1591 = vmatpush.msra.mxu0 0.0
        %1592 = vmatpush.msra.mxu0 0.0
        %1593 = vmatpush.msra.mxu0 0.0
        %1594 = vmatpush.msra.mxu0 0.0
        %1595 = vmatpush.msra.mxu0 0.0
        %1596 = vmatpush.msra.mxu0 %v1576
        %1597 = vmatmul.f32.gmra.mxu0 %v1579
        %v1598 = vpop.f32.mrf.mxu0
        %v1599 = vadd.f32 0.0, %v1598
        %1600 = vdwg.mxu0
        %1602 = vrot.lane.b32.xlu0 %v1599, 16
        %v1603 = vpop.permute.xlu0 %1602
        %1605 = vst.msk [vmem:[#allocation5] sm:$0xff] %vm1171, %v1603
        %v1606 = vld [vmem:[#allocation4] sm:$0xff]
        %1607 = vrot.lane.b32.xlu0 %v1355, 104
        %v1608 = vpop.permute.xlu0 %1607
        %1610 = vrot.lane.b32.xlu0 %v1606, 104
        %v1611 = vpop.permute.xlu0 %1610
        %v1612 = vsel %vm923, %v1608, 0
        %v1614 = vsel %vm923, %v1611, 0
        %1616 = vmatpush.xpose.msra.mxu0 0.0
        %1617 = vmatpush.xpose.msra.mxu0 0.0
        %1618 = vmatpush.xpose.msra.mxu0 0.0
        %1619 = vmatpush.xpose.msra.mxu0 0.0
        %1620 = vmatpush.xpose.msra.mxu0 0.0
        %1621 = vmatpush.xpose.msra.mxu0 0.0
        %1622 = vmatpush.xpose.msra.mxu0 0.0
        %1623 = vmatpush.xpose.msra.mxu0 0.0
        %1624 = vmatpush.xpose.msra.mxu0 0.0
        %1625 = vmatpush.xpose.msra.mxu0 0.0
        %1626 = vmatpush.xpose.msra.mxu0 0.0
        %1627 = vmatpush.xpose.msra.mxu0 0.0
        %1628 = vmatpush.xpose.msra.mxu0 0.0
        %1629 = vmatpush.xpose.msra.mxu0 0.0
        %1630 = vmatpush.xpose.msra.mxu0 0.0
        %1631 = vmatpush.xpose.msra.mxu0 %v1614
        %1632 = vmatmul.f32.gmra.mxu0 %v1612
        %v1633 = vpop.f32.mrf.mxu0
        %v1634 = vadd.f32 0.0, %v1633
        %1635 = vdwg.mxu0
        %v1636 = vsel %vm923, %v1634, -inf
        %1637 = vmax.xlane.f32.xlu0 %v1636
        %v1638 = vpop.xlane.xlu0 %1637
        %v1639 = vsub.f32 %v1634, %v1638
        %v1640 = vmul.f32 %v1639, 1.442695
        %v1641 = vpow.pop %v1640
        %v1642 = vsel %vm923, %v1641, 0.0
        %1643 = vadd.xlane.f32.xlu0 %v1642
        %v1644 = vpop.xlane.xlu0 %1643
        %v1645 = vrcp.pop %v1644
        %v1646 = vmul.f32 %v1644, %v1645
        %v1647 = vsub.f32 1.0, %v1646
        %v1648 = vmul.f32 %v1645, %v1647
        %v1649 = vadd.f32 %v1645, %v1648
        %vm1650 = vweird.f32 %v1644
        %vm1651 = vweird.f32 %v1645
        %vm1652 = vmor %vm1650, %vm1651
        %v1653 = vsel %vm1652, %v1645, %v1649
        %v1654 = vand.u32 2147483647, %v1644
        %vm1655 = vcmp.eq.f32.partialorder %v1654, 8.507059e+37
        %v1656 = vand.u32 %v1644, 2147483648
        %v1657 = vor.u32 1.1754944e-38, %v1656
        %v1658 = vsel %vm1655, %v1657, %v1653
        %v1659 = vmul.f32 %v1641, %v1658
        %1660 = vrot.lane.b32.xlu0 %v1606, 72
        %v1661 = vpop.permute.xlu0 %1660
        %v1664 = vsel %vm923, %v1659, 0
        %1666 = vmatpush.msra.mxu0 0.0
        %1667 = vmatpush.msra.mxu0 0.0
        %1668 = vmatpush.msra.mxu0 0.0
        %1669 = vmatpush.msra.mxu0 0.0
        %1670 = vmatpush.msra.mxu0 0.0
        %1671 = vmatpush.msra.mxu0 0.0
        %1672 = vmatpush.msra.mxu0 0.0
        %1673 = vmatpush.msra.mxu0 0.0
        %1674 = vmatpush.msra.mxu0 0.0
        %1675 = vmatpush.msra.mxu0 0.0
        %1676 = vmatpush.msra.mxu0 0.0
        %1677 = vmatpush.msra.mxu0 0.0
        %1678 = vmatpush.msra.mxu0 0.0
        %1679 = vmatpush.msra.mxu0 0.0
        %1680 = vmatpush.msra.mxu0 0.0
        %1681 = vmatpush.msra.mxu0 %v1661
        %1682 = vmatmul.f32.gmra.mxu0 %v1664
        %v1683 = vpop.f32.mrf.mxu0
        %v1684 = vadd.f32 0.0, %v1683
        %1685 = vdwg.mxu0
        %1687 = vrot.lane.b32.xlu0 %v1684, 24
        %v1688 = vpop.permute.xlu0 %1687
        %1690 = vst.msk [vmem:[#allocation5] sm:$0xff] %vm1257, %v1688
        %v1691 = vld [vmem:[#allocation5] sm:$0xff]
        %v1692 = vld [vmem:[#allocation12] sm:$0xff]
        %v1693 = vld [vmem:[#allocation12 + $0x8] sm:$0xff]
        %v1694 = vld [vmem:[#allocation12 + $0x10] sm:$0xff]
        %v1695 = vld [vmem:[#allocation12 + $0x18] sm:$0xff]
        %v1697 = vperm.slane %v1357, 0
        %v1700 = vsel %vm897, %v1691, 0
        %1702 = vmatpush.msra.mxu0 0.0
        %1703 = vmatpush.msra.mxu0 0.0
        %1704 = vmatpush.msra.mxu0 0.0
        %1705 = vmatpush.msra.mxu0 0.0
        %1706 = vmatpush.msra.mxu0 0.0
        %1707 = vmatpush.msra.mxu0 0.0
        %1708 = vmatpush.msra.mxu0 0.0
        %1709 = vmatpush.msra.mxu0 0.0
        %1710 = vmatpush.msra.mxu0 0.0
        %1711 = vmatpush.msra.mxu0 0.0
        %1712 = vmatpush.msra.mxu0 0.0
        %1713 = vmatpush.msra.mxu0 0.0
        %1714 = vmatpush.msra.mxu0 %v1695
        %1715 = vmatpush.msra.mxu0 %v1694
        %1716 = vmatpush.msra.mxu0 %v1693
        %1717 = vmatpush.msra.mxu0 %v1692
        %1718 = vmatmul.f32.gmra.mxu0 %v1700
        %v1719 = vpop.f32.mrf.mxu0
        %v1720 = vadd.f32 %v1697, %v1719
        %1721 = vdwg.mxu0
        %v1722 = vadd.f32 %v1290, %v1720
        %v1723 = vld [vmem:[%s6] sm:$0x1]
        %v1724 = vld [vmem:[%s7] sm:$0x1]
        %v1725 = vsel %vm897, %v1722, 0.0
        %1726 = vadd.xlane.f32.xlu0 %v1725
        %v1727 = vpop.xlane.xlu0 %1726
        %v1728 = vmul.f32 %v1727, %v1302
        %v1729 = vsub.f32 %v1722, %v1728
        %v1730 = vmul.f32 %v1729, %v1729
        %v1731 = vsel %vm897, %v1730, 0.0
        %1732 = vadd.xlane.f32.xlu0 %v1731
        %v1733 = vpop.xlane.xlu0 %1732
        %v1734 = vmul.f32 %v1733, %v1302
        %v1735 = vadd.f32 %v1734, 1e-05
        %v1736 = vrsqrt.pop %v1735
        %v1737 = vmul.f32 %v1736, %v1735
        %v1738 = vmul.f32 %v1737, %v1736
        %v1739 = vmul.f32 0.5, %v1738
        %v1740 = vsub.f32 1.5, %v1739
        %v1741 = vmul.f32 %v1736, %v1740
        %vm1742 = vweird.f32 %v1735
        %vm1743 = vweird.f32 %v1736
        %vm1744 = vmor %vm1742, %vm1743
        %v1745 = vsel %vm1744, %v1736, %v1741
        %v1746 = vmul.f32 %v1729, %v1745
        %v1748 = vperm.slane %v1723, 0
        %v1750 = vmul.f32 %v1746, %v1748
        %v1752 = vperm.slane %v1724, 0
        %v1754 = vadd.f32 %v1750, %v1752
        %v1755 = vld [vmem:[#allocation14] sm:$0xff]
        %v1756 = vld [vmem:[#allocation14 + $0x8] sm:$0xff]
        %v1757 = vld [vmem:[#allocation14 + $0x10] sm:$0xff]
        %v1758 = vld [vmem:[#allocation14 + $0x18] sm:$0xff]
        %v1759 = vld [vmem:[%s17] sm:$0x1]
        %v1761 = vperm.slane %v1759, 0
        %v1764 = vsel %vm897, %v1754, 0
        %1766 = vmatpush.msra.mxu0 0.0
        %1767 = vmatpush.msra.mxu0 0.0
        %1768 = vmatpush.msra.mxu0 0.0
        %1769 = vmatpush.msra.mxu0 0.0
        %1770 = vmatpush.msra.mxu0 0.0
        %1771 = vmatpush.msra.mxu0 0.0
        %1772 = vmatpush.msra.mxu0 0.0
        %1773 = vmatpush.msra.mxu0 0.0
        %1774 = vmatpush.msra.mxu0 0.0
        %1775 = vmatpush.msra.mxu0 0.0
        %1776 = vmatpush.msra.mxu0 0.0
        %1777 = vmatpush.msra.mxu0 0.0
        %1778 = vmatpush.msra.mxu0 %v1758
        %1779 = vmatpush.msra.mxu0 %v1757
        %1780 = vmatpush.msra.mxu0 %v1756
        %1781 = vmatpush.msra.mxu0 %v1755
        %1782 = vmatmul.f32.gmra.mxu0 %v1764
        %v1783 = vpop.f32.mrf.mxu0
        %v1784 = vadd.f32 %v1761, %v1783
        %1785 = vdwg.mxu0
        %v1786 = vld [vmem:[#allocation15] sm:$0xff]
        %v1787 = vld [vmem:[#allocation15 + $0x8] sm:$0xff]
        %v1788 = vld [vmem:[#allocation15 + $0x10] sm:$0xff]
        %v1789 = vld [vmem:[#allocation15 + $0x18] sm:$0xff]
        %v1790 = vld [vmem:[%s19] sm:$0x1]
        %v1792 = vperm.slane %v1790, 0
        %1794 = vmatpush.msra.mxu0 0.0
        %1795 = vmatpush.msra.mxu0 0.0
        %1796 = vmatpush.msra.mxu0 0.0
        %1797 = vmatpush.msra.mxu0 0.0
        %1798 = vmatpush.msra.mxu0 0.0
        %1799 = vmatpush.msra.mxu0 0.0
        %1800 = vmatpush.msra.mxu0 0.0
        %1801 = vmatpush.msra.mxu0 0.0
        %1802 = vmatpush.msra.mxu0 0.0
        %1803 = vmatpush.msra.mxu0 0.0
        %1804 = vmatpush.msra.mxu0 0.0
        %1805 = vmatpush.msra.mxu0 0.0
        %1806 = vmatpush.msra.mxu0 %v1789
        %1807 = vmatpush.msra.mxu0 %v1788
        %1808 = vmatpush.msra.mxu0 %v1787
        %1809 = vmatpush.msra.mxu0 %v1786
        %1810 = vmatmul.f32.gmra.mxu0 %v1764
        %v1811 = vpop.f32.mrf.mxu0
        %v1812 = vadd.f32 %v1792, %v1811
        %1813 = vdwg.mxu0
        %v1814 = vmul.f32 %v1812, 0.5
        %v1815 = vmul.f32 %v1812, 0.70710677
        %v1816 = vmul.f32 %v1815, %v1815
        %v1817 = vmin.f32 16.0, %v1816
        %v1818 = vmul.f32 %v1817, 2.1237322e-06
        %v1819 = vadd.f32 %v1818, 0.00028619796
        %v1820 = vmul.f32 %v1817, %v1819
        %v1821 = vadd.f32 %v1820, 0.0036580483
        %v1822 = vmul.f32 %v1817, %v1821
        %v1823 = vadd.f32 %v1822, 0.05243302
        %v1824 = vmul.f32 %v1817, %v1823
        %v1825 = vadd.f32 %v1824, 0.18741608
        %v1826 = vmul.f32 %v1817, %v1825
        %v1827 = vadd.f32 %v1826, 1.1283791
        %v1828 = vmul.f32 %v1815, %v1827
        %v1829 = vmul.f32 %v1817, 3.8918573e-05
        %v1830 = vadd.f32 %v1829, 0.001143296
        %v1831 = vmul.f32 %v1817, %v1830
        %v1832 = vadd.f32 %v1831, 0.014752088
        %v1833 = vmul.f32 %v1817, %v1832
        %v1834 = vadd.f32 %v1833, 0.112945676
        %v1835 = vmul.f32 %v1817, %v1834
        %v1836 = vadd.f32 %v1835, 0.4994258
        %v1837 = vmul.f32 %v1817, %v1836
        %v1838 = vadd.f32 %v1837, 1.0
        %v1839 = vrcp.pop %v1838
        %v1840 = vmul.f32 %v1838, %v1839
        %v1841 = vsub.f32 1.0, %v1840
        %v1842 = vmul.f32 %v1839, %v1841
        %v1843 = vadd.f32 %v1839, %v1842
        %vm1844 = vweird.f32 %v1838
        %vm1845 = vweird.f32 %v1839
        %vm1846 = vmor %vm1844, %vm1845
        %v1847 = vsel %vm1846, %v1839, %v1843
        %v1848 = vand.u32 2147483647, %v1838
        %vm1849 = vcmp.eq.f32.partialorder %v1848, 8.507059e+37
        %v1850 = vand.u32 %v1838, 2147483648
        %v1851 = vor.u32 1.1754944e-38, %v1850
        %v1852 = vsel %vm1849, %v1851, %v1847
        %v1853 = vmul.f32 %v1828, %v1852
        %v1854 = vmin.f32 %v1853, 1.0
        %v1855 = vmax.f32 %v1854, -1.0
        %v1856 = vadd.f32 %v1855, 1.0
        %v1857 = vmul.f32 %v1814, %v1856
        %v1858 = vmul.f32 %v1784, %v1857
        %v1859 = vld [vmem:[%s20] sm:$0xff]
        %v1860 = vld [vmem:[%s20 + $0x8] sm:$0xff]
        %v1861 = vld [vmem:[%s20 + $0x10] sm:$0xff]
        %v1862 = vld [vmem:[%s20 + $0x18] sm:$0xff]
        %v1863 = vld [vmem:[%s20 + $0x20] sm:$0xff]
        %v1864 = vld [vmem:[%s20 + $0x28] sm:$0xff]
        %v1865 = vld [vmem:[%s20 + $0x30] sm:$0xff]
        %v1866 = vld [vmem:[%s20 + $0x38] sm:$0xff]
        %v1867 = vld [vmem:[%s20 + $0x40] sm:$0xff]
        %v1868 = vld [vmem:[%s20 + $0x48] sm:$0xff]
        %v1869 = vld [vmem:[%s20 + $0x50] sm:$0xff]
        %v1870 = vld [vmem:[%s20 + $0x58] sm:$0xff]
        %v1871 = vld [vmem:[%s20 + $0x60] sm:$0xff]
        %v1872 = vld [vmem:[%s20 + $0x68] sm:$0xff]
        %v1873 = vld [vmem:[%s20 + $0x70] sm:$0xff]
        %v1874 = vld [vmem:[%s20 + $0x78] sm:$0xff]
        %v1875 = vld [vmem:[%s21] sm:$0x1]
        %v1877 = vperm.slane %v1875, 0
        %1879 = vmatpush.msra.mxu0 %v1874
        %1880 = vmatpush.msra.mxu0 %v1873
        %1881 = vmatpush.msra.mxu0 %v1872
        %1882 = vmatpush.msra.mxu0 %v1871
        %1883 = vmatpush.msra.mxu0 %v1870
        %1884 = vmatpush.msra.mxu0 %v1869
        %1885 = vmatpush.msra.mxu0 %v1868
        %1886 = vmatpush.msra.mxu0 %v1867
        %1887 = vmatpush.msra.mxu0 %v1866
        %1888 = vmatpush.msra.mxu0 %v1865
        %1889 = vmatpush.msra.mxu0 %v1864
        %1890 = vmatpush.msra.mxu0 %v1863
        %1891 = vmatpush.msra.mxu0 %v1862
        %1892 = vmatpush.msra.mxu0 %v1861
        %1893 = vmatpush.msra.mxu0 %v1860
        %1894 = vmatpush.msra.mxu0 %v1859
        %1895 = vmatmul.f32.gmra.mxu0 %v1858
        %v1896 = vpop.f32.mrf.mxu0
        %v1897 = vadd.f32 %v1877, %v1896
        %1898 = vdwg.mxu0
        %v1899 = vadd.f32 %v1722, %v1897
        %1900 = vst.msk [vmem:[%s783] sm:$0xff] %vm897, %v1899
        %s1901 = sand.u32 %s534, 1
        %s1902 = scalar_lea.sflag [#allocation8], %s1901
        %s1903 = sand.u32 %s534, 1
        %s1904 = smul.addr %s1903, 8
        %s1905 = scalar_lea.vmem [#allocation17], %s1904
        // Predicated region
        $region137: #{tpu_custom_call.1} parent=107 // pred_check
          %p1906 = pneg %p544
        $region138: #{tpu_custom_call.1} parent=107 // pred_check_branch
          %1908 = sbr.rel (%p1906) target = $region140
        $region139: #{tpu_custom_call.1} parent=107 // pred_region
          %1910 = vsyncadd %s1902, 0
          %s1911 = sadd.s32 %s45, %s44
          %s1912 = smul.addr %s1911, 8
          %s1913 = scalar_lea.hbm %s22, %s1912
          %s1915 = sshll.u32 %s1905, 4
          %s1916 = int_to_ptr.vmem [resolvable:$true] %s1915
          %s1917 = sshll.u32 %s1913, 4
          %s1918 = int_to_ptr.hbm [resolvable:$true] %s1917
          %1920 = dma.vmem_to_hbm [thread:$0]  %s1916, 128, %s1918, %s1902
        $region140: #{tpu_custom_call.1} parent=107 // pred_fallthru
          _
      $region108: #{tpu_custom_call.1} parent=5 // pred_fallthru
        _
      %p1921 = scmp.le.s32.totalorder 2, %s35
      // Predicated region
      $region141: #{tpu_custom_call.1} parent=5 // pred_check
        %p1922 = pneg %p1921
      $region142: #{tpu_custom_call.1} parent=5 // pred_check_branch
        %1924 = sbr.rel (%p1922) target = $region144
      $region143: #{tpu_custom_call.1} parent=5 // pred_region
        %s1925 = ssub.s32 %s35, 2
        // Predicated region
        $region145: #{tpu_custom_call.1} parent=143 // pred_check
          %p1926 = pneg %p550
        $region146: #{tpu_custom_call.1} parent=143 // pred_check_branch
          %1928 = sbr.rel (%p1926) target = $region148
        $region147: #{tpu_custom_call.1} parent=143 // pred_region
          %s1929 = sand.u32 %s535, 1
          %s1930 = scalar_lea.sflag [#allocation8], %s1929
          %s1931 = sand.u32 %s535, 1
          %s1932 = smul.addr %s1931, 8
          %s1933 = scalar_lea.vmem [#allocation17], %s1932
          %1935 = dma.done %s1930, 128
        $region148: #{tpu_custom_call.1} parent=143 // pred_fallthru
          _
      $region144: #{tpu_custom_call.1} parent=5 // pred_fallthru
        _
    $region6: #{tpu_custom_call.1} parent=1 // loop_footer
      %s39 = sadd.s32 1, %s35
    $region7: #{tpu_custom_call.1} parent=1 // loop_footer_branch
      %34 = sbr.rel target = $region3
    $region8: #{tpu_custom_call.1} parent=1 // loop_exit
      _
    %1936 = vsyncpa [#allocation7], 1
    %s1937 = scalar_lea.sflag [#allocation7], 1
    %1938 = vsyncpa %s1937, 1
    %1939 = vsyncpa [#allocation10], 1
    %1940 = vsyncpa [#allocation13], 1
    %1941 = vsyncpa [#allocation16], 1
    %1942 = vsyncpa [#allocation8], 1
    %s1943 = scalar_lea.sflag [#allocation8], 1
    %1944 = vsyncpa %s1943, 1

</llo_original>
